<compile_context>
chip_gen: v7x
topology: tpu7x:2x2x1
jax: 0.10.0
libtpu: 0.0.40
codegen_flags: <defaults>
</compile_context>

<pallas_src>
import math

import jax
import jax.numpy as jnp
from jax.experimental import pallas as pl
from jax.experimental.pallas import tpu as pltpu

H1, H2 = 512, 256
_MIB = 1024 * 1024


def _disc_kernel(x_ref, w1_ref, b1_ref, w2_ref, b2_ref, w3_ref, b3_ref, o_ref):
    # x arrives f32 (no wrapper-side cast / extra HBM pass); cast to bf16 for the MXU.
    x = x_ref[...].astype(jnp.bfloat16)
    # Layer 1: (TB, D)bf16 @ (D, 512)bf16 -> f32 accumulation on the MXU; bias+ReLU on VPU.
    h1 = jnp.dot(x, w1_ref[...], preferred_element_type=jnp.float32)
    h1 = jnp.maximum(h1 + b1_ref[...], 0.0)
    # Layer 2: activations back to bf16 for the MXU, f32 accumulation.
    h2 = jnp.dot(h1.astype(jnp.bfloat16), w2_ref[...], preferred_element_type=jnp.float32)
    h2 = jnp.maximum(h2 + b2_ref[...], 0.0)
    # Layer 3 (out_features=1): VPU multiply + XLU lane reduction instead of an N=1 MXU
    # matmul; scalar bias lives in SMEM.
    logits = jnp.sum(h2 * w3_ref[...], axis=-1, keepdims=True) + b3_ref[0, 0]
    o_ref[...] = jax.nn.sigmoid(logits)


def init_params(img_size, key):
    """Params mimicking PyTorch nn.Linear default init (U[-1/sqrt(fan_in), 1/sqrt(fan_in)])."""
    d_in = img_size * img_size * 3
    dims = [(d_in, H1), (H1, H2), (H2, 1)]
    params = []
    for i, (fan_in, fan_out) in enumerate(dims):
        kw, kb = jax.random.split(jax.random.fold_in(key, i))
        bound = 1.0 / math.sqrt(fan_in)
        w = jax.random.uniform(kw, (fan_in, fan_out), jnp.float32, -bound, bound)
        b = jax.random.uniform(kb, (1, fan_out), jnp.float32, -bound, bound)
        params.append((w, b))
    return params


def _tpu_vmem_budgets():
    """(scoped_default, hard_cap) in bytes, per TensorCore, by TPU generation."""
    kind = ""
    try:
        kind = jax.devices()[0].device_kind.lower()
    except Exception:
        pass
    if "v7" in kind:
        return 32 * _MIB, 48 * _MIB   # 64 MiB physical per TC -> leave headroom
    if "v6" in kind:
        return 32 * _MIB, 96 * _MIB   # 128 MiB physical
    if "v5" in kind:
        return 16 * _MIB, 96 * _MIB   # 16 MiB scoped default, 128 MiB physical
    return 16 * _MIB, 48 * _MIB       # unknown generation: most conservative


def _vmem_estimate(tb, d):
    """Conservative VMEM bytes for one grid step at batch tile tb, feature dim d."""
    return (
        2 * tb * d * 4                  # f32 x tiles, double-buffered by the pipeline
        + tb * d * 2                    # in-kernel bf16 copy of x
        + d * H1 * 2 + H1 * H2 * 2      # resident bf16 weights (single-buffered)
        + (H1 + 2 * H2) * 4             # f32 biases + f32 w3 row
        + tb * H1 * 6 + tb * H2 * 4     # h1 (f32 + bf16 copy), h2 f32
        + 2 * tb * 4                    # output tiles (double-buffered)
    )


def _pick_batch_tile(B, D, budget):
    tb = 128
    for cand in (2048, 1024, 512, 256, 128):
        if _vmem_estimate(cand, D) <= budget:
            tb = cand
            break
    # Don't tile larger than the (128-rounded) batch.
    b_round = max(128, ((B + 127) // 128) * 128)
    tb = min(tb, b_round)
    # v7x megacore: ensure the "parallel" batch axis has >= 2 grid steps when the batch
    # is large enough so both TensorCores get work (no-op on single-core v5e/v6e).
    while tb > 128 and (b_round + tb - 1) // tb < 2:
        tb //= 2
    return tb


def discriminator_forward(img, params):
    """img: (B, 3, H, W) float32 (NCHW). Returns (B, 1) float32 in (0, 1)."""
    B = img.shape[0]
    x = img.reshape(B, -1)          # stays f32; bf16 cast happens inside the kernel
    D = x.shape[1]
    (w1, b1), (w2, b2), (w3, b3) = params

    # Lane-align the contraction dim once (zero padding is numerically exact).
    D_pad = ((D + 127) // 128) * 128
    if D_pad != D:
        x = jnp.pad(x, ((0, 0), (0, D_pad - D)))
        w1 = jnp.pad(w1, ((0, D_pad - D), (0, 0)))

    scoped_default, hard_cap = _tpu_vmem_budgets()
    # TODO(synk): for very large images (D*512*2 bytes alone approaching the per-core
    # VMEM cap, img_size >~ 100 on v7x) the first-layer weight needs K-tiling over D;
    # not implemented here.
    TB = _pick_batch_tile(B, D_pad, hard_cap)
    B_pad = ((B + TB - 1) // TB) * TB
    if B_pad != B:
        x = jnp.pad(x, ((0, B_pad - B), (0, 0)))
    grid = (B_pad // TB,)

    w1b = w1.astype(jnp.bfloat16)
    w2b = w2.astype(jnp.bfloat16)
    w3_row = w3.reshape(1, H2)       # (1, 256) f32, used on the VPU
    b3s = b3.reshape(1, 1)           # scalar bias -> SMEM

    cp_kwargs = dict(dimension_semantics=("parallel",))   # megacore sharding on v7x
    vmem_est = _vmem_estimate(TB, D_pad)
    if vmem_est > scoped_default:
        cp_kwargs["vmem_limit_bytes"] = int(
            min(max(vmem_est * 5 // 4 + 2 * _MIB, scoped_default), hard_cap)
        )

    resident = dict(pipeline_mode=pl.Buffered(1))  # constant index_map: DMA once, 1 buffer

    out = pl.pallas_call(
        _disc_kernel,
        out_shape=jax.ShapeDtypeStruct((B_pad, 1), jnp.float32),
        grid=grid,
        in_specs=[
            pl.BlockSpec((TB, D_pad), lambda i: (i, 0)),            # pipelined x tile (f32)
            pl.BlockSpec((D_pad, H1), lambda i: (0, 0), **resident),
            pl.BlockSpec((1, H1), lambda i: (0, 0), **resident),
            pl.BlockSpec((H1, H2), lambda i: (0, 0), **resident),
            pl.BlockSpec((1, H2), lambda i: (0, 0), **resident),
            pl.BlockSpec((1, H2), lambda i: (0, 0), **resident),
            pl.BlockSpec(memory_space=pltpu.MemorySpace.SMEM),      # scalar b3
        ],
        out_specs=pl.BlockSpec((TB, 1), lambda i: (i, 0)),
        compiler_params=pltpu.CompilerParams(**cp_kwargs),
    )(x, w1b, b1, w2b, b2, w3_row, b3s)

    return out[:B]  # drop batch padding


def reference_forward(img, params):
    B = img.shape[0]
    x = img.reshape(B, -1)
    (w1, b1), (w2, b2), (w3, b3) = params
    h1 = jnp.maximum(x @ w1 + b1, 0.0)
    h2 = jnp.maximum(h1 @ w2 + b2, 0.0)
    return jax.nn.sigmoid(h2 @ w3 + b3)


if __name__ == "__main__":
    img_size = 16  # small demo shape; D = img_size*img_size*3 = 768
    batch = 2

    key = jax.random.PRNGKey(0)
    k_img, k_params = jax.random.split(key)
    img = jax.random.normal(k_img, (batch, 3, img_size, img_size), jnp.float32)
    params = init_params(img_size, k_params)

    out = discriminator_forward(img, params)
    out = jax.block_until_ready(out)

    ref = reference_forward(img, params)
    assert out.shape == (batch, 1), out.shape
    # bf16 MXU inputs/weights -> loosened tolerance vs the f32 reference.
    assert jnp.allclose(out, ref, atol=2e-2, rtol=2e-2), (out, ref)
    print("KERNEL_OK")
</pallas_src>

<mosaic_0001>
module attributes {stable_mosaic.version = 11 : i64} {
  func.func @_disc_kernel(%arg0: i32, %arg1: memref<128x768xf32, #tpu.memory_space<vmem>>, %arg2: memref<768x512xbf16, #tpu.memory_space<vmem>>, %arg3: memref<1x512xf32, #tpu.memory_space<vmem>>, %arg4: memref<512x256xbf16, #tpu.memory_space<vmem>>, %arg5: memref<1x256xf32, #tpu.memory_space<vmem>>, %arg6: memref<1x256xf32, #tpu.memory_space<vmem>>, %arg7: memref<1x1xf32, #tpu.memory_space<smem>>, %arg8: memref<128x1xf32, #tpu.memory_space<vmem>>) attributes {dimension_semantics = [#tpu.dimension_semantics<parallel>], iteration_bounds = array<i64: 1>, scalar_prefetch = 0 : i64, scratch_operands = 0 : i64, tpu.core_type = #tpu.core_type<tc>, window_params = [{transform_indices = @transform_0, window_bounds = array<i64: 128, 768>}, {pipeline_mode = #tpu.pipeline_mode<synchronous>, transform_indices = @transform_1, window_bounds = array<i64: 768, 512>}, {pipeline_mode = #tpu.pipeline_mode<synchronous>, transform_indices = @transform_2, window_bounds = array<i64: 1, 512>}, {pipeline_mode = #tpu.pipeline_mode<synchronous>, transform_indices = @transform_3, window_bounds = array<i64: 512, 256>}, {pipeline_mode = #tpu.pipeline_mode<synchronous>, transform_indices = @transform_4, window_bounds = array<i64: 1, 256>}, {pipeline_mode = #tpu.pipeline_mode<synchronous>, transform_indices = @transform_5, window_bounds = array<i64: 1, 256>}, {transform_indices = @transform_6, window_bounds = array<i64: 1, 1>}, {transform_indices = @transform_7, window_bounds = array<i64: 128, 1>}]} {
    %c0 = arith.constant 0 : index
    %c0_0 = arith.constant 0 : index
    %0 = vector.load %arg1[%c0, %c0_0] : memref<128x768xf32, #tpu.memory_space<vmem>>, vector<128x768xf32>
    %1 = arith.truncf %0 : vector<128x768xf32> to vector<128x768xbf16>
    %c0_1 = arith.constant 0 : index
    %c0_2 = arith.constant 0 : index
    %2 = vector.load %arg2[%c0_1, %c0_2] : memref<768x512xbf16, #tpu.memory_space<vmem>>, vector<768x512xbf16>
    %cst = arith.constant dense<0.000000e+00> : vector<128x512xf32>
    %3 = tpu.matmul %1, %2, %cst {dimension_numbers = #tpu.dot_dimension_numbers<[1], [0], [0], [1], [0, 0, 1, 1], [], []>} : vector<128x768xbf16>, vector<768x512xbf16>, vector<128x512xf32> -> vector<128x512xf32>
    %c0_3 = arith.constant 0 : index
    %c0_4 = arith.constant 0 : index
    %4 = vector.load %arg3[%c0_3, %c0_4] : memref<1x512xf32, #tpu.memory_space<vmem>>, vector<1x512xf32>
    %5 = vector.broadcast %4 : vector<1x512xf32> to vector<128x512xf32>
    %6 = arith.addf %3, %5 : vector<128x512xf32>
    %cst_5 = arith.constant 0.000000e+00 : f32
    %7 = vector.broadcast %cst_5 : f32 to vector<128x512xf32>
    %8 = arith.maximumf %6, %7 : vector<128x512xf32>
    %9 = arith.truncf %8 : vector<128x512xf32> to vector<128x512xbf16>
    %c0_6 = arith.constant 0 : index
    %c0_7 = arith.constant 0 : index
    %10 = vector.load %arg4[%c0_6, %c0_7] : memref<512x256xbf16, #tpu.memory_space<vmem>>, vector<512x256xbf16>
    %cst_8 = arith.constant dense<0.000000e+00> : vector<128x256xf32>
    %11 = tpu.matmul %9, %10, %cst_8 {dimension_numbers = #tpu.dot_dimension_numbers<[1], [0], [0], [1], [0, 0, 1, 1], [], []>} : vector<128x512xbf16>, vector<512x256xbf16>, vector<128x256xf32> -> vector<128x256xf32>
    %c0_9 = arith.constant 0 : index
    %c0_10 = arith.constant 0 : index
    %12 = vector.load %arg5[%c0_9, %c0_10] : memref<1x256xf32, #tpu.memory_space<vmem>>, vector<1x256xf32>
    %13 = vector.broadcast %12 : vector<1x256xf32> to vector<128x256xf32>
    %14 = arith.addf %11, %13 : vector<128x256xf32>
    %cst_11 = arith.constant 0.000000e+00 : f32
    %15 = vector.broadcast %cst_11 : f32 to vector<128x256xf32>
    %16 = arith.maximumf %14, %15 : vector<128x256xf32>
    %c0_12 = arith.constant 0 : index
    %c0_13 = arith.constant 0 : index
    %17 = vector.load %arg6[%c0_12, %c0_13] : memref<1x256xf32, #tpu.memory_space<vmem>>, vector<1x256xf32>
    %18 = vector.broadcast %17 : vector<1x256xf32> to vector<128x256xf32>
    %19 = arith.mulf %16, %18 : vector<128x256xf32>
    %cst_14 = arith.constant dense<0.000000e+00> : vector<128xf32>
    %20 = vector.multi_reduction <add>, %19, %cst_14 [1] : vector<128x256xf32> to vector<128xf32>
    %21 = vector.shape_cast %20 : vector<128xf32> to vector<128x1xf32>
    %c0_15 = arith.constant 0 : index
    %c0_16 = arith.constant 0 : index
    %22 = memref.load %arg7[%c0_15, %c0_16] : memref<1x1xf32, #tpu.memory_space<smem>>
    %23 = vector.broadcast %22 : f32 to vector<128x1xf32>
    %24 = arith.addf %21, %23 : vector<128x1xf32>
    %25 = arith.negf %24 : vector<128x1xf32>
    %26 = math.exp %25 : vector<128x1xf32>
    %cst_17 = arith.constant 1.000000e+00 : f32
    %27 = vector.broadcast %cst_17 : f32 to vector<128x1xf32>
    %28 = arith.addf %27, %26 : vector<128x1xf32>
    %29 = arith.divf %27, %28 : vector<128x1xf32>
    %c0_18 = arith.constant 0 : index
    %c0_19 = arith.constant 0 : index
    %30 = vector.load %arg8[%c0_18, %c0_19] : memref<128x1xf32, #tpu.memory_space<vmem>>, vector<128x1xf32>
    tpu.vector_store %arg8[%c0_18, %c0_19], %29 {strides = array<i32>} : memref<128x1xf32, #tpu.memory_space<vmem>>, vector<128x1xf32>,
    return
  }
  func.func @transform_0(%arg0: i32) -> (i32, i32) {
    %c0_i32 = arith.constant 0 : i32
    %c0_i32_0 = arith.constant 0 : i32
    return %arg0, %c0_i32 : i32, i32
  }
  func.func @transform_1(%arg0: i32) -> (i32, i32) {
    %c0_i32 = arith.constant 0 : i32
    %c0_i32_0 = arith.constant 0 : i32
    %c0_i32_1 = arith.constant 0 : i32
    return %c0_i32, %c0_i32_0 : i32, i32
  }
  func.func @transform_2(%arg0: i32) -> (i32, i32) {
    %c0_i32 = arith.constant 0 : i32
    %c0_i32_0 = arith.constant 0 : i32
    %c0_i32_1 = arith.constant 0 : i32
    return %c0_i32, %c0_i32_0 : i32, i32
  }
  func.func @transform_3(%arg0: i32) -> (i32, i32) {
    %c0_i32 = arith.constant 0 : i32
    %c0_i32_0 = arith.constant 0 : i32
    %c0_i32_1 = arith.constant 0 : i32
    return %c0_i32, %c0_i32_0 : i32, i32
  }
  func.func @transform_4(%arg0: i32) -> (i32, i32) {
    %c0_i32 = arith.constant 0 : i32
    %c0_i32_0 = arith.constant 0 : i32
    %c0_i32_1 = arith.constant 0 : i32
    return %c0_i32, %c0_i32_0 : i32, i32
  }
  func.func @transform_5(%arg0: i32) -> (i32, i32) {
    %c0_i32 = arith.constant 0 : i32
    %c0_i32_0 = arith.constant 0 : i32
    %c0_i32_1 = arith.constant 0 : i32
    return %c0_i32, %c0_i32_0 : i32, i32
  }
  func.func @transform_6(%arg0: i32) -> (i32, i32) {
    %c0_i32 = arith.constant 0 : i32
    %c0_i32_0 = arith.constant 0 : i32
    %c0_i32_1 = arith.constant 0 : i32
    return %c0_i32, %c0_i32_0 : i32, i32
  }
  func.func @transform_7(%arg0: i32) -> (i32, i32) {
    %c0_i32 = arith.constant 0 : i32
    %c0_i32_0 = arith.constant 0 : i32
    return %arg0, %c0_i32 : i32, i32
  }
}

</mosaic_0001>

<llo_original>
// kernel: tpu_custom_call.1
$region0: #{tpu_custom_call.1}
  #allocation0 [shape = 'u32[]', space=smem, size = 0x4, offset = 0x4, fixed_abs, tag = 'smem constant byte address 0x4 - core index']
  #allocation1 [shape = 'u32[144,128]{1,0:T(1,128)}', space=vmem, size = 0x12000, scoped, tag = 'internal scratch']
  #allocation2 [shape = 'f32[1,1]{1,0:T(1,128)S(6)}', space=smem, size = 0x200, scoped, tag = 'scoped memory for tpu_custom_call.1']
  %s0 = inlined_call_operand.hbm [shape: f32[128,768], index: 0, kind: input, shape index: {}]
  %s1 = inlined_call_operand.hbm [shape: bf16[768,512], index: 1, kind: input, shape index: {}]
  %s2 = inlined_call_operand.vmem [shape: f32[1,512], index: 2, kind: input, shape index: {}]
  %s3 = inlined_call_operand.hbm [shape: bf16[512,256], index: 3, kind: input, shape index: {}]
  %s4 = inlined_call_operand.vmem [shape: f32[1,256], index: 4, kind: input, shape index: {}]
  %s5 = inlined_call_operand.vmem [shape: f32[1,256], index: 5, kind: input, shape index: {}]
  %s6 = inlined_call_operand.<no memory space> [shape: f32[1,1], index: 6, kind: input, shape index: {}]
  %s7 = inlined_call_operand.vmem [shape: f32[128,1], index: 7, kind: output, shape index: {}]
  %s8 = sld [smem:[#allocation0]]
  $region50: #{tpu_custom_call.1} parent=0
    _
  %s10 = ssub.s32 1, %s8
  %s11 = scalar_select 0, %s10, %s8
  %12 = sst [smem:[#allocation2]] %s6
  $region1: #{tpu_custom_call.1} parent=0
    #allocation3 [shape = 'u8[393216]{0}', space=vmem, size = 0x60000, scoped, tag = 'input window, operand 0, single buffered']
    #allocation4 [shape = 's32[1]{0}', space=sflag, size = 0x4, scoped, tag = 'scoped memory for tpu_custom_call.1']
    #allocation5 [shape = 'u8[786432]{0}', space=vmem, size = 0xc0000, scoped, tag = 'input window, operand 1, single buffered']
    #allocation6 [shape = 's32[1]{0}', space=sflag, size = 0x4, scoped, tag = 'scoped memory for tpu_custom_call.1']
    #allocation7 [shape = 'u8[262144]{0}', space=vmem, size = 0x40000, scoped, tag = 'input window, operand 3, single buffered']
    %13 = vsyncpa [#allocation4], 0
    %14 = vsyncpa [#allocation6], 0
    // Predicated region
    $region2: #{tpu_custom_call.1} parent=1 // pred_check
      _
    $region3: #{tpu_custom_call.1} parent=1 // pred_check_branch
      %16 = sbr.rel (0) target = $region5
    $region4: #{tpu_custom_call.1} parent=1 // pred_region
      %s18 = ssub.s32 12288, 12288
      %19 = vsyncadd [#allocation4], %s18
      %s20 = sshll.u32 [#allocation3], 4
      %s21 = int_to_ptr.vmem [resolvable:$true] %s20
      %26 = dma.hbm_to_vmem [thread:$0]  %s0, 12288, %s21, [#allocation4], 768, 768, 48
    $region5: #{tpu_custom_call.1} parent=1 // pred_fallthru
      _
    // Predicated region
    $region6: #{tpu_custom_call.1} parent=1 // pred_check
      _
    $region7: #{tpu_custom_call.1} parent=1 // pred_check_branch
      %28 = sbr.rel (0) target = $region9
    $region8: #{tpu_custom_call.1} parent=1 // pred_region
      %s30 = ssub.s32 24576, 24576
      %31 = vsyncadd [#allocation6], %s30
      %s32 = sshll.u32 [#allocation5], 4
      %s33 = int_to_ptr.vmem [resolvable:$true] %s32
      %38 = dma.hbm_to_vmem [thread:$0]  %s1, 24576, %s33, [#allocation6], 256, 256, 16
    $region9: #{tpu_custom_call.1} parent=1 // pred_fallthru
      _
    // Predicated region
    $region10: #{tpu_custom_call.1} parent=1 // pred_check
      _
    $region11: #{tpu_custom_call.1} parent=1 // pred_check_branch
      %40 = sbr.rel (0) target = $region13
    $region12: #{tpu_custom_call.1} parent=1 // pred_region
      _
    $region13: #{tpu_custom_call.1} parent=1 // pred_fallthru
      _
    // Predicated region
    $region14: #{tpu_custom_call.1} parent=1 // pred_check
      _
    $region15: #{tpu_custom_call.1} parent=1 // pred_check_branch
      %42 = sbr.rel (0) target = $region17
    $region16: #{tpu_custom_call.1} parent=1 // pred_region
      %s44 = ssub.s32 8192, 8192
      %45 = vsyncadd [#allocation6], %s44
      %s46 = sshll.u32 [#allocation7], 4
      %s47 = int_to_ptr.vmem [resolvable:$true] %s46
      %52 = dma.hbm_to_vmem [thread:$0]  %s3, 8192, %s47, [#allocation6], 128, 128, 8
    $region17: #{tpu_custom_call.1} parent=1 // pred_fallthru
      _
    // Predicated region
    $region18: #{tpu_custom_call.1} parent=1 // pred_check
      _
    $region19: #{tpu_custom_call.1} parent=1 // pred_check_branch
      %54 = sbr.rel (0) target = $region21
    $region20: #{tpu_custom_call.1} parent=1 // pred_region
      _
    $region21: #{tpu_custom_call.1} parent=1 // pred_fallthru
      _
    // Predicated region
    $region22: #{tpu_custom_call.1} parent=1 // pred_check
      _
    $region23: #{tpu_custom_call.1} parent=1 // pred_check_branch
      %56 = sbr.rel (0) target = $region25
    $region24: #{tpu_custom_call.1} parent=1 // pred_region
      _
    $region25: #{tpu_custom_call.1} parent=1 // pred_fallthru
      _
    // Predicated region
    $region26: #{tpu_custom_call.1} parent=1 // pred_check
      _
    $region27: #{tpu_custom_call.1} parent=1 // pred_check_branch
      %58 = sbr.rel (0) target = $region29
    $region28: #{tpu_custom_call.1} parent=1 // pred_region
      _
    $region29: #{tpu_custom_call.1} parent=1 // pred_fallthru
      _
    // Predicated region
    $region30: #{tpu_custom_call.1} parent=1 // pred_check
      _
    $region31: #{tpu_custom_call.1} parent=1 // pred_check_branch
      %60 = sbr.rel (0) target = $region33
    $region32: #{tpu_custom_call.1} parent=1 // pred_region
      %61 = dma.done [#allocation4], 12288
    $region33: #{tpu_custom_call.1} parent=1 // pred_fallthru
      _
    // Predicated region
    $region34: #{tpu_custom_call.1} parent=1 // pred_check
      _
    $region35: #{tpu_custom_call.1} parent=1 // pred_check_branch
      %63 = sbr.rel (0) target = $region37
    $region36: #{tpu_custom_call.1} parent=1 // pred_region
      %64 = dma.done [#allocation6], 24576
    $region37: #{tpu_custom_call.1} parent=1 // pred_fallthru
      _
    // Predicated region
    $region38: #{tpu_custom_call.1} parent=1 // pred_check
      _
    $region39: #{tpu_custom_call.1} parent=1 // pred_check_branch
      %66 = sbr.rel (0) target = $region41
    $region40: #{tpu_custom_call.1} parent=1 // pred_region
      %67 = dma.done [#allocation6], 8192
    $region41: #{tpu_custom_call.1} parent=1 // pred_fallthru
      _
    %v68 = vld [vmem:[#allocation3] sm:$0xff]
    %v69 = vld [vmem:[#allocation3 + $0x8] sm:$0xff]
    %v70 = vld [vmem:[#allocation3 + $0x10] sm:$0xff]
    %v71 = vld [vmem:[#allocation3 + $0x18] sm:$0xff]
    %v72 = vld [vmem:[#allocation3 + $0x20] sm:$0xff]
    %v73 = vld [vmem:[#allocation3 + $0x28] sm:$0xff]
    %v74 = vld [vmem:[#allocation3 + $0x30] sm:$0xff]
    %v75 = vld [vmem:[#allocation3 + $0x38] sm:$0xff]
    %v76 = vld [vmem:[#allocation3 + $0x40] sm:$0xff]
    %v77 = vld [vmem:[#allocation3 + $0x48] sm:$0xff]
    %v78 = vld [vmem:[#allocation3 + $0x50] sm:$0xff]
    %v79 = vld [vmem:[#allocation3 + $0x58] sm:$0xff]
    %v80 = vld [vmem:[#allocation3 + $0x60] sm:$0xff]
    %v81 = vld [vmem:[#allocation3 + $0x68] sm:$0xff]
    %v82 = vld [vmem:[#allocation3 + $0x70] sm:$0xff]
    %v83 = vld [vmem:[#allocation3 + $0x78] sm:$0xff]
    %v84 = vld [vmem:[#allocation3 + $0x80] sm:$0xff]
    %v85 = vld [vmem:[#allocation3 + $0x88] sm:$0xff]
    %v86 = vld [vmem:[#allocation3 + $0x90] sm:$0xff]
    %v87 = vld [vmem:[#allocation3 + $0x98] sm:$0xff]
    %v88 = vld [vmem:[#allocation3 + $0xa0] sm:$0xff]
    %v89 = vld [vmem:[#allocation3 + $0xa8] sm:$0xff]
    %v90 = vld [vmem:[#allocation3 + $0xb0] sm:$0xff]
    %v91 = vld [vmem:[#allocation3 + $0xb8] sm:$0xff]
    %v92 = vld [vmem:[#allocation3 + $0xc0] sm:$0xff]
    %v93 = vld [vmem:[#allocation3 + $0xc8] sm:$0xff]
    %v94 = vld [vmem:[#allocation3 + $0xd0] sm:$0xff]
    %v95 = vld [vmem:[#allocation3 + $0xd8] sm:$0xff]
    %v96 = vld [vmem:[#allocation3 + $0xe0] sm:$0xff]
    %v97 = vld [vmem:[#allocation3 + $0xe8] sm:$0xff]
    %v98 = vld [vmem:[#allocation3 + $0xf0] sm:$0xff]
    %v99 = vld [vmem:[#allocation3 + $0xf8] sm:$0xff]
    %v100 = vld [vmem:[#allocation3 + $0x100] sm:$0xff]
    %v101 = vld [vmem:[#allocation3 + $0x108] sm:$0xff]
    %v102 = vld [vmem:[#allocation3 + $0x110] sm:$0xff]
    %v103 = vld [vmem:[#allocation3 + $0x118] sm:$0xff]
    %v104 = vld [vmem:[#allocation3 + $0x120] sm:$0xff]
    %v105 = vld [vmem:[#allocation3 + $0x128] sm:$0xff]
    %v106 = vld [vmem:[#allocation3 + $0x130] sm:$0xff]
    %v107 = vld [vmem:[#allocation3 + $0x138] sm:$0xff]
    %v108 = vld [vmem:[#allocation3 + $0x140] sm:$0xff]
    %v109 = vld [vmem:[#allocation3 + $0x148] sm:$0xff]
    %v110 = vld [vmem:[#allocation3 + $0x150] sm:$0xff]
    %v111 = vld [vmem:[#allocation3 + $0x158] sm:$0xff]
    %v112 = vld [vmem:[#allocation3 + $0x160] sm:$0xff]
    %v113 = vld [vmem:[#allocation3 + $0x168] sm:$0xff]
    %v114 = vld [vmem:[#allocation3 + $0x170] sm:$0xff]
    %v115 = vld [vmem:[#allocation3 + $0x178] sm:$0xff]
    %v116 = vld [vmem:[#allocation3 + $0x180] sm:$0xff]
    %v117 = vld [vmem:[#allocation3 + $0x188] sm:$0xff]
    %v118 = vld [vmem:[#allocation3 + $0x190] sm:$0xff]
    %v119 = vld [vmem:[#allocation3 + $0x198] sm:$0xff]
    %v120 = vld [vmem:[#allocation3 + $0x1a0] sm:$0xff]
    %v121 = vld [vmem:[#allocation3 + $0x1a8] sm:$0xff]
    %v122 = vld [vmem:[#allocation3 + $0x1b0] sm:$0xff]
    %v123 = vld [vmem:[#allocation3 + $0x1b8] sm:$0xff]
    %v124 = vld [vmem:[#allocation3 + $0x1c0] sm:$0xff]
    %v125 = vld [vmem:[#allocation3 + $0x1c8] sm:$0xff]
    %v126 = vld [vmem:[#allocation3 + $0x1d0] sm:$0xff]
    %v127 = vld [vmem:[#allocation3 + $0x1d8] sm:$0xff]
    %v128 = vld [vmem:[#allocation3 + $0x1e0] sm:$0xff]
    %v129 = vld [vmem:[#allocation3 + $0x1e8] sm:$0xff]
    %v130 = vld [vmem:[#allocation3 + $0x1f0] sm:$0xff]
    %v131 = vld [vmem:[#allocation3 + $0x1f8] sm:$0xff]
    %v132 = vld [vmem:[#allocation3 + $0x200] sm:$0xff]
    %v133 = vld [vmem:[#allocation3 + $0x208] sm:$0xff]
    %v134 = vld [vmem:[#allocation3 + $0x210] sm:$0xff]
    %v135 = vld [vmem:[#allocation3 + $0x218] sm:$0xff]
    %v136 = vld [vmem:[#allocation3 + $0x220] sm:$0xff]
    %v137 = vld [vmem:[#allocation3 + $0x228] sm:$0xff]
    %v138 = vld [vmem:[#allocation3 + $0x230] sm:$0xff]
    %v139 = vld [vmem:[#allocation3 + $0x238] sm:$0xff]
    %v140 = vld [vmem:[#allocation3 + $0x240] sm:$0xff]
    %v141 = vld [vmem:[#allocation3 + $0x248] sm:$0xff]
    %v142 = vld [vmem:[#allocation3 + $0x250] sm:$0xff]
    %v143 = vld [vmem:[#allocation3 + $0x258] sm:$0xff]
    %v144 = vld [vmem:[#allocation3 + $0x260] sm:$0xff]
    %v145 = vld [vmem:[#allocation3 + $0x268] sm:$0xff]
    %v146 = vld [vmem:[#allocation3 + $0x270] sm:$0xff]
    %v147 = vld [vmem:[#allocation3 + $0x278] sm:$0xff]
    %v148 = vld [vmem:[#allocation3 + $0x280] sm:$0xff]
    %v149 = vld [vmem:[#allocation3 + $0x288] sm:$0xff]
    %v150 = vld [vmem:[#allocation3 + $0x290] sm:$0xff]
    %v151 = vld [vmem:[#allocation3 + $0x298] sm:$0xff]
    %v152 = vld [vmem:[#allocation3 + $0x2a0] sm:$0xff]
    %v153 = vld [vmem:[#allocation3 + $0x2a8] sm:$0xff]
    %v154 = vld [vmem:[#allocation3 + $0x2b0] sm:$0xff]
    %v155 = vld [vmem:[#allocation3 + $0x2b8] sm:$0xff]
    %v156 = vld [vmem:[#allocation3 + $0x2c0] sm:$0xff]
    %v157 = vld [vmem:[#allocation3 + $0x2c8] sm:$0xff]
    %v158 = vld [vmem:[#allocation3 + $0x2d0] sm:$0xff]
    %v159 = vld [vmem:[#allocation3 + $0x2d8] sm:$0xff]
    %v160 = vld [vmem:[#allocation3 + $0x2e0] sm:$0xff]
    %v161 = vld [vmem:[#allocation3 + $0x2e8] sm:$0xff]
    %v162 = vld [vmem:[#allocation3 + $0x2f0] sm:$0xff]
    %v163 = vld [vmem:[#allocation3 + $0x2f8] sm:$0xff]
    %v164 = vpack.c.bf16 %v74, %v68
    %v165 = vpack.c.bf16 %v75, %v69
    %v166 = vpack.c.bf16 %v76, %v70
    %v167 = vpack.c.bf16 %v77, %v71
    %v168 = vpack.c.bf16 %v78, %v72
    %v169 = vpack.c.bf16 %v79, %v73
    %v170 = vpack.c.bf16 %v86, %v80
    %v171 = vpack.c.bf16 %v87, %v81
    %v172 = vpack.c.bf16 %v88, %v82
    %v173 = vpack.c.bf16 %v89, %v83
    %v174 = vpack.c.bf16 %v90, %v84
    %v175 = vpack.c.bf16 %v91, %v85
    %v176 = vpack.c.bf16 %v98, %v92
    %v177 = vpack.c.bf16 %v99, %v93
    %v178 = vpack.c.bf16 %v100, %v94
    %v179 = vpack.c.bf16 %v101, %v95
    %v180 = vpack.c.bf16 %v102, %v96
    %v181 = vpack.c.bf16 %v103, %v97
    %v182 = vpack.c.bf16 %v110, %v104
    %v183 = vpack.c.bf16 %v111, %v105
    %v184 = vpack.c.bf16 %v112, %v106
    %v185 = vpack.c.bf16 %v113, %v107
    %v186 = vpack.c.bf16 %v114, %v108
    %v187 = vpack.c.bf16 %v115, %v109
    %v188 = vpack.c.bf16 %v122, %v116
    %v189 = vpack.c.bf16 %v123, %v117
    %v190 = vpack.c.bf16 %v124, %v118
    %v191 = vpack.c.bf16 %v125, %v119
    %v192 = vpack.c.bf16 %v126, %v120
    %v193 = vpack.c.bf16 %v127, %v121
    %v194 = vpack.c.bf16 %v134, %v128
    %v195 = vpack.c.bf16 %v135, %v129
    %v196 = vpack.c.bf16 %v136, %v130
    %v197 = vpack.c.bf16 %v137, %v131
    %v198 = vpack.c.bf16 %v138, %v132
    %v199 = vpack.c.bf16 %v139, %v133
    %v200 = vpack.c.bf16 %v146, %v140
    %v201 = vpack.c.bf16 %v147, %v141
    %v202 = vpack.c.bf16 %v148, %v142
    %v203 = vpack.c.bf16 %v149, %v143
    %v204 = vpack.c.bf16 %v150, %v144
    %v205 = vpack.c.bf16 %v151, %v145
    %v206 = vpack.c.bf16 %v158, %v152
    %v207 = vpack.c.bf16 %v159, %v153
    %v208 = vpack.c.bf16 %v160, %v154
    %v209 = vpack.c.bf16 %v161, %v155
    %v210 = vpack.c.bf16 %v162, %v156
    %v211 = vpack.c.bf16 %v163, %v157
    %v212 = vld [vmem:[#allocation5] sm:$0xff]
    %v213 = vld [vmem:[#allocation5 + $0x8] sm:$0xff]
    %v214 = vld [vmem:[#allocation5 + $0x10] sm:$0xff]
    %v215 = vld [vmem:[#allocation5 + $0x18] sm:$0xff]
    %v216 = vld [vmem:[#allocation5 + $0x20] sm:$0xff]
    %v217 = vld [vmem:[#allocation5 + $0x28] sm:$0xff]
    %v218 = vld [vmem:[#allocation5 + $0x30] sm:$0xff]
    %v219 = vld [vmem:[#allocation5 + $0x38] sm:$0xff]
    %v220 = vld [vmem:[#allocation5 + $0x40] sm:$0xff]
    %v221 = vld [vmem:[#allocation5 + $0x48] sm:$0xff]
    %v222 = vld [vmem:[#allocation5 + $0x50] sm:$0xff]
    %v223 = vld [vmem:[#allocation5 + $0x58] sm:$0xff]
    %v224 = vld [vmem:[#allocation5 + $0x60] sm:$0xff]
    %v225 = vld [vmem:[#allocation5 + $0x68] sm:$0xff]
    %v226 = vld [vmem:[#allocation5 + $0x70] sm:$0xff]
    %v227 = vld [vmem:[#allocation5 + $0x78] sm:$0xff]
    %v228 = vld [vmem:[#allocation5 + $0x80] sm:$0xff]
    %v229 = vld [vmem:[#allocation5 + $0x88] sm:$0xff]
    %v230 = vld [vmem:[#allocation5 + $0x90] sm:$0xff]
    %v231 = vld [vmem:[#allocation5 + $0x98] sm:$0xff]
    %v232 = vld [vmem:[#allocation5 + $0xa0] sm:$0xff]
    %v233 = vld [vmem:[#allocation5 + $0xa8] sm:$0xff]
    %v234 = vld [vmem:[#allocation5 + $0xb0] sm:$0xff]
    %v235 = vld [vmem:[#allocation5 + $0xb8] sm:$0xff]
    %v236 = vld [vmem:[#allocation5 + $0xc0] sm:$0xff]
    %v237 = vld [vmem:[#allocation5 + $0xc8] sm:$0xff]
    %v238 = vld [vmem:[#allocation5 + $0xd0] sm:$0xff]
    %v239 = vld [vmem:[#allocation5 + $0xd8] sm:$0xff]
    %v240 = vld [vmem:[#allocation5 + $0xe0] sm:$0xff]
    %v241 = vld [vmem:[#allocation5 + $0xe8] sm:$0xff]
    %v242 = vld [vmem:[#allocation5 + $0xf0] sm:$0xff]
    %v243 = vld [vmem:[#allocation5 + $0xf8] sm:$0xff]
    %v244 = vld [vmem:[#allocation5 + $0x100] sm:$0xff]
    %v245 = vld [vmem:[#allocation5 + $0x108] sm:$0xff]
    %v246 = vld [vmem:[#allocation5 + $0x110] sm:$0xff]
    %v247 = vld [vmem:[#allocation5 + $0x118] sm:$0xff]
    %v248 = vld [vmem:[#allocation5 + $0x120] sm:$0xff]
    %v249 = vld [vmem:[#allocation5 + $0x128] sm:$0xff]
    %v250 = vld [vmem:[#allocation5 + $0x130] sm:$0xff]
    %v251 = vld [vmem:[#allocation5 + $0x138] sm:$0xff]
    %v252 = vld [vmem:[#allocation5 + $0x140] sm:$0xff]
    %v253 = vld [vmem:[#allocation5 + $0x148] sm:$0xff]
    %v254 = vld [vmem:[#allocation5 + $0x150] sm:$0xff]
    %v255 = vld [vmem:[#allocation5 + $0x158] sm:$0xff]
    %v256 = vld [vmem:[#allocation5 + $0x160] sm:$0xff]
    %v257 = vld [vmem:[#allocation5 + $0x168] sm:$0xff]
    %v258 = vld [vmem:[#allocation5 + $0x170] sm:$0xff]
    %v259 = vld [vmem:[#allocation5 + $0x178] sm:$0xff]
    %v260 = vld [vmem:[#allocation5 + $0x180] sm:$0xff]
    %v261 = vld [vmem:[#allocation5 + $0x188] sm:$0xff]
    %v262 = vld [vmem:[#allocation5 + $0x190] sm:$0xff]
    %v263 = vld [vmem:[#allocation5 + $0x198] sm:$0xff]
    %v264 = vld [vmem:[#allocation5 + $0x1a0] sm:$0xff]
    %v265 = vld [vmem:[#allocation5 + $0x1a8] sm:$0xff]
    %v266 = vld [vmem:[#allocation5 + $0x1b0] sm:$0xff]
    %v267 = vld [vmem:[#allocation5 + $0x1b8] sm:$0xff]
    %v268 = vld [vmem:[#allocation5 + $0x1c0] sm:$0xff]
    %v269 = vld [vmem:[#allocation5 + $0x1c8] sm:$0xff]
    %v270 = vld [vmem:[#allocation5 + $0x1d0] sm:$0xff]
    %v271 = vld [vmem:[#allocation5 + $0x1d8] sm:$0xff]
    %v272 = vld [vmem:[#allocation5 + $0x1e0] sm:$0xff]
    %v273 = vld [vmem:[#allocation5 + $0x1e8] sm:$0xff]
    %v274 = vld [vmem:[#allocation5 + $0x1f0] sm:$0xff]
    %v275 = vld [vmem:[#allocation5 + $0x1f8] sm:$0xff]
    %v276 = vld [vmem:[#allocation5 + $0x200] sm:$0xff]
    %v277 = vld [vmem:[#allocation5 + $0x208] sm:$0xff]
    %v278 = vld [vmem:[#allocation5 + $0x210] sm:$0xff]
    %v279 = vld [vmem:[#allocation5 + $0x218] sm:$0xff]
    %v280 = vld [vmem:[#allocation5 + $0x220] sm:$0xff]
    %v281 = vld [vmem:[#allocation5 + $0x228] sm:$0xff]
    %v282 = vld [vmem:[#allocation5 + $0x230] sm:$0xff]
    %v283 = vld [vmem:[#allocation5 + $0x238] sm:$0xff]
    %v284 = vld [vmem:[#allocation5 + $0x240] sm:$0xff]
    %v285 = vld [vmem:[#allocation5 + $0x248] sm:$0xff]
    %v286 = vld [vmem:[#allocation5 + $0x250] sm:$0xff]
    %v287 = vld [vmem:[#allocation5 + $0x258] sm:$0xff]
    %v288 = vld [vmem:[#allocation5 + $0x260] sm:$0xff]
    %v289 = vld [vmem:[#allocation5 + $0x268] sm:$0xff]
    %v290 = vld [vmem:[#allocation5 + $0x270] sm:$0xff]
    %v291 = vld [vmem:[#allocation5 + $0x278] sm:$0xff]
    %v292 = vld [vmem:[#allocation5 + $0x280] sm:$0xff]
    %v293 = vld [vmem:[#allocation5 + $0x288] sm:$0xff]
    %v294 = vld [vmem:[#allocation5 + $0x290] sm:$0xff]
    %v295 = vld [vmem:[#allocation5 + $0x298] sm:$0xff]
    %v296 = vld [vmem:[#allocation5 + $0x2a0] sm:$0xff]
    %v297 = vld [vmem:[#allocation5 + $0x2a8] sm:$0xff]
    %v298 = vld [vmem:[#allocation5 + $0x2b0] sm:$0xff]
    %v299 = vld [vmem:[#allocation5 + $0x2b8] sm:$0xff]
    %v300 = vld [vmem:[#allocation5 + $0x2c0] sm:$0xff]
    %v301 = vld [vmem:[#allocation5 + $0x2c8] sm:$0xff]
    %v302 = vld [vmem:[#allocation5 + $0x2d0] sm:$0xff]
    %v303 = vld [vmem:[#allocation5 + $0x2d8] sm:$0xff]
    %v304 = vld [vmem:[#allocation5 + $0x2e0] sm:$0xff]
    %v305 = vld [vmem:[#allocation5 + $0x2e8] sm:$0xff]
    %v306 = vld [vmem:[#allocation5 + $0x2f0] sm:$0xff]
    %v307 = vld [vmem:[#allocation5 + $0x2f8] sm:$0xff]
    %v308 = vld [vmem:[#allocation5 + $0x300] sm:$0xff]
    %v309 = vld [vmem:[#allocation5 + $0x308] sm:$0xff]
    %v310 = vld [vmem:[#allocation5 + $0x310] sm:$0xff]
    %v311 = vld [vmem:[#allocation5 + $0x318] sm:$0xff]
    %v312 = vld [vmem:[#allocation5 + $0x320] sm:$0xff]
    %v313 = vld [vmem:[#allocation5 + $0x328] sm:$0xff]
    %v314 = vld [vmem:[#allocation5 + $0x330] sm:$0xff]
    %v315 = vld [vmem:[#allocation5 + $0x338] sm:$0xff]
    %v316 = vld [vmem:[#allocation5 + $0x340] sm:$0xff]
    %v317 = vld [vmem:[#allocation5 + $0x348] sm:$0xff]
    %v318 = vld [vmem:[#allocation5 + $0x350] sm:$0xff]
    %v319 = vld [vmem:[#allocation5 + $0x358] sm:$0xff]
    %v320 = vld [vmem:[#allocation5 + $0x360] sm:$0xff]
    %v321 = vld [vmem:[#allocation5 + $0x368] sm:$0xff]
    %v322 = vld [vmem:[#allocation5 + $0x370] sm:$0xff]
    %v323 = vld [vmem:[#allocation5 + $0x378] sm:$0xff]
    %v324 = vld [vmem:[#allocation5 + $0x380] sm:$0xff]
    %v325 = vld [vmem:[#allocation5 + $0x388] sm:$0xff]
    %v326 = vld [vmem:[#allocation5 + $0x390] sm:$0xff]
    %v327 = vld [vmem:[#allocation5 + $0x398] sm:$0xff]
    %v328 = vld [vmem:[#allocation5 + $0x3a0] sm:$0xff]
    %v329 = vld [vmem:[#allocation5 + $0x3a8] sm:$0xff]
    %v330 = vld [vmem:[#allocation5 + $0x3b0] sm:$0xff]
    %v331 = vld [vmem:[#allocation5 + $0x3b8] sm:$0xff]
    %v332 = vld [vmem:[#allocation5 + $0x3c0] sm:$0xff]
    %v333 = vld [vmem:[#allocation5 + $0x3c8] sm:$0xff]
    %v334 = vld [vmem:[#allocation5 + $0x3d0] sm:$0xff]
    %v335 = vld [vmem:[#allocation5 + $0x3d8] sm:$0xff]
    %v336 = vld [vmem:[#allocation5 + $0x3e0] sm:$0xff]
    %v337 = vld [vmem:[#allocation5 + $0x3e8] sm:$0xff]
    %v338 = vld [vmem:[#allocation5 + $0x3f0] sm:$0xff]
    %v339 = vld [vmem:[#allocation5 + $0x3f8] sm:$0xff]
    %v340 = vld [vmem:[#allocation5 + $0x400] sm:$0xff]
    %v341 = vld [vmem:[#allocation5 + $0x408] sm:$0xff]
    %v342 = vld [vmem:[#allocation5 + $0x410] sm:$0xff]
    %v343 = vld [vmem:[#allocation5 + $0x418] sm:$0xff]
    %v344 = vld [vmem:[#allocation5 + $0x420] sm:$0xff]
    %v345 = vld [vmem:[#allocation5 + $0x428] sm:$0xff]
    %v346 = vld [vmem:[#allocation5 + $0x430] sm:$0xff]
    %v347 = vld [vmem:[#allocation5 + $0x438] sm:$0xff]
    %v348 = vld [vmem:[#allocation5 + $0x440] sm:$0xff]
    %v349 = vld [vmem:[#allocation5 + $0x448] sm:$0xff]
    %v350 = vld [vmem:[#allocation5 + $0x450] sm:$0xff]
    %v351 = vld [vmem:[#allocation5 + $0x458] sm:$0xff]
    %v352 = vld [vmem:[#allocation5 + $0x460] sm:$0xff]
    %v353 = vld [vmem:[#allocation5 + $0x468] sm:$0xff]
    %v354 = vld [vmem:[#allocation5 + $0x470] sm:$0xff]
    %v355 = vld [vmem:[#allocation5 + $0x478] sm:$0xff]
    %v356 = vld [vmem:[#allocation5 + $0x480] sm:$0xff]
    %v357 = vld [vmem:[#allocation5 + $0x488] sm:$0xff]
    %v358 = vld [vmem:[#allocation5 + $0x490] sm:$0xff]
    %v359 = vld [vmem:[#allocation5 + $0x498] sm:$0xff]
    %v360 = vld [vmem:[#allocation5 + $0x4a0] sm:$0xff]
    %v361 = vld [vmem:[#allocation5 + $0x4a8] sm:$0xff]
    %v362 = vld [vmem:[#allocation5 + $0x4b0] sm:$0xff]
    %v363 = vld [vmem:[#allocation5 + $0x4b8] sm:$0xff]
    %v364 = vld [vmem:[#allocation5 + $0x4c0] sm:$0xff]
    %v365 = vld [vmem:[#allocation5 + $0x4c8] sm:$0xff]
    %v366 = vld [vmem:[#allocation5 + $0x4d0] sm:$0xff]
    %v367 = vld [vmem:[#allocation5 + $0x4d8] sm:$0xff]
    %v368 = vld [vmem:[#allocation5 + $0x4e0] sm:$0xff]
    %v369 = vld [vmem:[#allocation5 + $0x4e8] sm:$0xff]
    %v370 = vld [vmem:[#allocation5 + $0x4f0] sm:$0xff]
    %v371 = vld [vmem:[#allocation5 + $0x4f8] sm:$0xff]
    %v372 = vld [vmem:[#allocation5 + $0x500] sm:$0xff]
    %v373 = vld [vmem:[#allocation5 + $0x508] sm:$0xff]
    %v374 = vld [vmem:[#allocation5 + $0x510] sm:$0xff]
    %v375 = vld [vmem:[#allocation5 + $0x518] sm:$0xff]
    %v376 = vld [vmem:[#allocation5 + $0x520] sm:$0xff]
    %v377 = vld [vmem:[#allocation5 + $0x528] sm:$0xff]
    %v378 = vld [vmem:[#allocation5 + $0x530] sm:$0xff]
    %v379 = vld [vmem:[#allocation5 + $0x538] sm:$0xff]
    %v380 = vld [vmem:[#allocation5 + $0x540] sm:$0xff]
    %v381 = vld [vmem:[#allocation5 + $0x548] sm:$0xff]
    %v382 = vld [vmem:[#allocation5 + $0x550] sm:$0xff]
    %v383 = vld [vmem:[#allocation5 + $0x558] sm:$0xff]
    %v384 = vld [vmem:[#allocation5 + $0x560] sm:$0xff]
    %v385 = vld [vmem:[#allocation5 + $0x568] sm:$0xff]
    %v386 = vld [vmem:[#allocation5 + $0x570] sm:$0xff]
    %v387 = vld [vmem:[#allocation5 + $0x578] sm:$0xff]
    %v388 = vld [vmem:[#allocation5 + $0x580] sm:$0xff]
    %v389 = vld [vmem:[#allocation5 + $0x588] sm:$0xff]
    %v390 = vld [vmem:[#allocation5 + $0x590] sm:$0xff]
    %v391 = vld [vmem:[#allocation5 + $0x598] sm:$0xff]
    %v392 = vld [vmem:[#allocation5 + $0x5a0] sm:$0xff]
    %v393 = vld [vmem:[#allocation5 + $0x5a8] sm:$0xff]
    %v394 = vld [vmem:[#allocation5 + $0x5b0] sm:$0xff]
    %v395 = vld [vmem:[#allocation5 + $0x5b8] sm:$0xff]
    %v396 = vld [vmem:[#allocation5 + $0x5c0] sm:$0xff]
    %v397 = vld [vmem:[#allocation5 + $0x5c8] sm:$0xff]
    %v398 = vld [vmem:[#allocation5 + $0x5d0] sm:$0xff]
    %v399 = vld [vmem:[#allocation5 + $0x5d8] sm:$0xff]
    %v400 = vld [vmem:[#allocation5 + $0x5e0] sm:$0xff]
    %v401 = vld [vmem:[#allocation5 + $0x5e8] sm:$0xff]
    %v402 = vld [vmem:[#allocation5 + $0x5f0] sm:$0xff]
    %v403 = vld [vmem:[#allocation5 + $0x5f8] sm:$0xff]
    %v404 = vld [vmem:[%s2] sm:$0xf]
    %v406 = vlaneseq
    %v407 = vshrl.u32 %v406, 7
    %v408 = vsub.s32 0, %v407
    %v409 = vrot.slane %v404, %v408
    %v410 = vlaneseq
    %v411 = vshrl.u32 %v410, 7
    %v412 = vsub.s32 1, %v411
    %v413 = vrot.slane %v404, %v412
    %v414 = vlaneseq
    %v415 = vshrl.u32 %v414, 7
    %v416 = vsub.s32 2, %v415
    %v417 = vrot.slane %v404, %v416
    %v418 = vlaneseq
    %v419 = vshrl.u32 %v418, 7
    %v420 = vsub.s32 3, %v419
    %v421 = vrot.slane %v404, %v420
    %v618 = vunpack.c.l.b16 %v212
    %v619 = vunpack.c.h.b16 %v212
    %v620 = vunpack.c.l.b16 %v213
    %v621 = vunpack.c.h.b16 %v213
    %v622 = vunpack.c.l.b16 %v214
    %v623 = vunpack.c.h.b16 %v214
    %v624 = vunpack.c.l.b16 %v215
    %v625 = vunpack.c.h.b16 %v215
    %v626 = vunpack.c.l.b16 %v216
    %v627 = vunpack.c.h.b16 %v216
    %v628 = vunpack.c.l.b16 %v217
    %v629 = vunpack.c.h.b16 %v217
    %v630 = vunpack.c.l.b16 %v218
    %v631 = vunpack.c.h.b16 %v218
    %v632 = vunpack.c.l.b16 %v219
    %v633 = vunpack.c.h.b16 %v219
    %v634 = vunpack.c.l.b16 %v220
    %v635 = vunpack.c.h.b16 %v220
    %v636 = vunpack.c.l.b16 %v221
    %v637 = vunpack.c.h.b16 %v221
    %v638 = vunpack.c.l.b16 %v222
    %v639 = vunpack.c.h.b16 %v222
    %v640 = vunpack.c.l.b16 %v223
    %v641 = vunpack.c.h.b16 %v223
    %v642 = vunpack.c.l.b16 %v224
    %v643 = vunpack.c.h.b16 %v224
    %v644 = vunpack.c.l.b16 %v225
    %v645 = vunpack.c.h.b16 %v225
    %v646 = vunpack.c.l.b16 %v226
    %v647 = vunpack.c.h.b16 %v226
    %v648 = vunpack.c.l.b16 %v227
    %v649 = vunpack.c.h.b16 %v227
    %v650 = vunpack.c.l.b16 %v228
    %v651 = vunpack.c.h.b16 %v228
    %v652 = vunpack.c.l.b16 %v229
    %v653 = vunpack.c.h.b16 %v229
    %v654 = vunpack.c.l.b16 %v230
    %v655 = vunpack.c.h.b16 %v230
    %v656 = vunpack.c.l.b16 %v231
    %v657 = vunpack.c.h.b16 %v231
    %v658 = vunpack.c.l.b16 %v232
    %v659 = vunpack.c.h.b16 %v232
    %v660 = vunpack.c.l.b16 %v233
    %v661 = vunpack.c.h.b16 %v233
    %v662 = vunpack.c.l.b16 %v234
    %v663 = vunpack.c.h.b16 %v234
    %v664 = vunpack.c.l.b16 %v235
    %v665 = vunpack.c.h.b16 %v235
    %v666 = vunpack.c.l.b16 %v236
    %v667 = vunpack.c.h.b16 %v236
    %v668 = vunpack.c.l.b16 %v237
    %v669 = vunpack.c.h.b16 %v237
    %v670 = vunpack.c.l.b16 %v238
    %v671 = vunpack.c.h.b16 %v238
    %v672 = vunpack.c.l.b16 %v239
    %v673 = vunpack.c.h.b16 %v239
    %v674 = vunpack.c.l.b16 %v240
    %v675 = vunpack.c.h.b16 %v240
    %v676 = vunpack.c.l.b16 %v241
    %v677 = vunpack.c.h.b16 %v241
    %v678 = vunpack.c.l.b16 %v242
    %v679 = vunpack.c.h.b16 %v242
    %v680 = vunpack.c.l.b16 %v243
    %v681 = vunpack.c.h.b16 %v243
    %v682 = vunpack.c.l.b16 %v244
    %v683 = vunpack.c.h.b16 %v244
    %v684 = vunpack.c.l.b16 %v245
    %v685 = vunpack.c.h.b16 %v245
    %v686 = vunpack.c.l.b16 %v246
    %v687 = vunpack.c.h.b16 %v246
    %v688 = vunpack.c.l.b16 %v247
    %v689 = vunpack.c.h.b16 %v247
    %v690 = vunpack.c.l.b16 %v248
    %v691 = vunpack.c.h.b16 %v248
    %v692 = vunpack.c.l.b16 %v249
    %v693 = vunpack.c.h.b16 %v249
    %v694 = vunpack.c.l.b16 %v250
    %v695 = vunpack.c.h.b16 %v250
    %v696 = vunpack.c.l.b16 %v251
    %v697 = vunpack.c.h.b16 %v251
    %v698 = vunpack.c.l.b16 %v252
    %v699 = vunpack.c.h.b16 %v252
    %v700 = vunpack.c.l.b16 %v253
    %v701 = vunpack.c.h.b16 %v253
    %v702 = vunpack.c.l.b16 %v254
    %v703 = vunpack.c.h.b16 %v254
    %v704 = vunpack.c.l.b16 %v255
    %v705 = vunpack.c.h.b16 %v255
    %v706 = vunpack.c.l.b16 %v256
    %v707 = vunpack.c.h.b16 %v256
    %v708 = vunpack.c.l.b16 %v257
    %v709 = vunpack.c.h.b16 %v257
    %v710 = vunpack.c.l.b16 %v258
    %v711 = vunpack.c.h.b16 %v258
    %v712 = vunpack.c.l.b16 %v259
    %v713 = vunpack.c.h.b16 %v259
    %v714 = vunpack.c.l.b16 %v260
    %v715 = vunpack.c.h.b16 %v260
    %v716 = vunpack.c.l.b16 %v261
    %v717 = vunpack.c.h.b16 %v261
    %v718 = vunpack.c.l.b16 %v262
    %v719 = vunpack.c.h.b16 %v262
    %v720 = vunpack.c.l.b16 %v263
    %v721 = vunpack.c.h.b16 %v263
    %v722 = vunpack.c.l.b16 %v264
    %v723 = vunpack.c.h.b16 %v264
    %v724 = vunpack.c.l.b16 %v265
    %v725 = vunpack.c.h.b16 %v265
    %v726 = vunpack.c.l.b16 %v266
    %v727 = vunpack.c.h.b16 %v266
    %v728 = vunpack.c.l.b16 %v267
    %v729 = vunpack.c.h.b16 %v267
    %v730 = vunpack.c.l.b16 %v268
    %v731 = vunpack.c.h.b16 %v268
    %v732 = vunpack.c.l.b16 %v269
    %v733 = vunpack.c.h.b16 %v269
    %v734 = vunpack.c.l.b16 %v270
    %v735 = vunpack.c.h.b16 %v270
    %v736 = vunpack.c.l.b16 %v271
    %v737 = vunpack.c.h.b16 %v271
    %v738 = vunpack.c.l.b16 %v272
    %v739 = vunpack.c.h.b16 %v272
    %v740 = vunpack.c.l.b16 %v273
    %v741 = vunpack.c.h.b16 %v273
    %v742 = vunpack.c.l.b16 %v274
    %v743 = vunpack.c.h.b16 %v274
    %v744 = vunpack.c.l.b16 %v275
    %v745 = vunpack.c.h.b16 %v275
    %v746 = vunpack.c.l.b16 %v276
    %v747 = vunpack.c.h.b16 %v276
    %v748 = vunpack.c.l.b16 %v277
    %v749 = vunpack.c.h.b16 %v277
    %v750 = vunpack.c.l.b16 %v278
    %v751 = vunpack.c.h.b16 %v278
    %v752 = vunpack.c.l.b16 %v279
    %v753 = vunpack.c.h.b16 %v279
    %v754 = vunpack.c.l.b16 %v280
    %v755 = vunpack.c.h.b16 %v280
    %v756 = vunpack.c.l.b16 %v281
    %v757 = vunpack.c.h.b16 %v281
    %v758 = vunpack.c.l.b16 %v282
    %v759 = vunpack.c.h.b16 %v282
    %v760 = vunpack.c.l.b16 %v283
    %v761 = vunpack.c.h.b16 %v283
    %v762 = vunpack.c.l.b16 %v284
    %v763 = vunpack.c.h.b16 %v284
    %v764 = vunpack.c.l.b16 %v285
    %v765 = vunpack.c.h.b16 %v285
    %v766 = vunpack.c.l.b16 %v286
    %v767 = vunpack.c.h.b16 %v286
    %v768 = vunpack.c.l.b16 %v287
    %v769 = vunpack.c.h.b16 %v287
    %v770 = vunpack.c.l.b16 %v288
    %v771 = vunpack.c.h.b16 %v288
    %v772 = vunpack.c.l.b16 %v289
    %v773 = vunpack.c.h.b16 %v289
    %v774 = vunpack.c.l.b16 %v290
    %v775 = vunpack.c.h.b16 %v290
    %v776 = vunpack.c.l.b16 %v291
    %v777 = vunpack.c.h.b16 %v291
    %v778 = vunpack.c.l.b16 %v292
    %v779 = vunpack.c.h.b16 %v292
    %v780 = vunpack.c.l.b16 %v293
    %v781 = vunpack.c.h.b16 %v293
    %v782 = vunpack.c.l.b16 %v294
    %v783 = vunpack.c.h.b16 %v294
    %v784 = vunpack.c.l.b16 %v295
    %v785 = vunpack.c.h.b16 %v295
    %v786 = vunpack.c.l.b16 %v296
    %v787 = vunpack.c.h.b16 %v296
    %v788 = vunpack.c.l.b16 %v297
    %v789 = vunpack.c.h.b16 %v297
    %v790 = vunpack.c.l.b16 %v298
    %v791 = vunpack.c.h.b16 %v298
    %v792 = vunpack.c.l.b16 %v299
    %v793 = vunpack.c.h.b16 %v299
    %v794 = vunpack.c.l.b16 %v300
    %v795 = vunpack.c.h.b16 %v300
    %v796 = vunpack.c.l.b16 %v301
    %v797 = vunpack.c.h.b16 %v301
    %v798 = vunpack.c.l.b16 %v302
    %v799 = vunpack.c.h.b16 %v302
    %v800 = vunpack.c.l.b16 %v303
    %v801 = vunpack.c.h.b16 %v303
    %v802 = vunpack.c.l.b16 %v304
    %v803 = vunpack.c.h.b16 %v304
    %v804 = vunpack.c.l.b16 %v305
    %v805 = vunpack.c.h.b16 %v305
    %v806 = vunpack.c.l.b16 %v306
    %v807 = vunpack.c.h.b16 %v306
    %v808 = vunpack.c.l.b16 %v307
    %v809 = vunpack.c.h.b16 %v307
    %v810 = vunpack.c.l.b16 %v308
    %v811 = vunpack.c.h.b16 %v308
    %v812 = vunpack.c.l.b16 %v309
    %v813 = vunpack.c.h.b16 %v309
    %v814 = vunpack.c.l.b16 %v310
    %v815 = vunpack.c.h.b16 %v310
    %v816 = vunpack.c.l.b16 %v311
    %v817 = vunpack.c.h.b16 %v311
    %v818 = vunpack.c.l.b16 %v312
    %v819 = vunpack.c.h.b16 %v312
    %v820 = vunpack.c.l.b16 %v313
    %v821 = vunpack.c.h.b16 %v313
    %v822 = vunpack.c.l.b16 %v314
    %v823 = vunpack.c.h.b16 %v314
    %v824 = vunpack.c.l.b16 %v315
    %v825 = vunpack.c.h.b16 %v315
    %v826 = vunpack.c.l.b16 %v316
    %v827 = vunpack.c.h.b16 %v316
    %v828 = vunpack.c.l.b16 %v317
    %v829 = vunpack.c.h.b16 %v317
    %v830 = vunpack.c.l.b16 %v318
    %v831 = vunpack.c.h.b16 %v318
    %v832 = vunpack.c.l.b16 %v319
    %v833 = vunpack.c.h.b16 %v319
    %v834 = vunpack.c.l.b16 %v320
    %v835 = vunpack.c.h.b16 %v320
    %v836 = vunpack.c.l.b16 %v321
    %v837 = vunpack.c.h.b16 %v321
    %v838 = vunpack.c.l.b16 %v322
    %v839 = vunpack.c.h.b16 %v322
    %v840 = vunpack.c.l.b16 %v323
    %v841 = vunpack.c.h.b16 %v323
    %v842 = vunpack.c.l.b16 %v324
    %v843 = vunpack.c.h.b16 %v324
    %v844 = vunpack.c.l.b16 %v325
    %v845 = vunpack.c.h.b16 %v325
    %v846 = vunpack.c.l.b16 %v326
    %v847 = vunpack.c.h.b16 %v326
    %v848 = vunpack.c.l.b16 %v327
    %v849 = vunpack.c.h.b16 %v327
    %v850 = vunpack.c.l.b16 %v328
    %v851 = vunpack.c.h.b16 %v328
    %v852 = vunpack.c.l.b16 %v329
    %v853 = vunpack.c.h.b16 %v329
    %v854 = vunpack.c.l.b16 %v330
    %v855 = vunpack.c.h.b16 %v330
    %v856 = vunpack.c.l.b16 %v331
    %v857 = vunpack.c.h.b16 %v331
    %v858 = vunpack.c.l.b16 %v332
    %v859 = vunpack.c.h.b16 %v332
    %v860 = vunpack.c.l.b16 %v333
    %v861 = vunpack.c.h.b16 %v333
    %v862 = vunpack.c.l.b16 %v334
    %v863 = vunpack.c.h.b16 %v334
    %v864 = vunpack.c.l.b16 %v335
    %v865 = vunpack.c.h.b16 %v335
    %v866 = vunpack.c.l.b16 %v336
    %v867 = vunpack.c.h.b16 %v336
    %v868 = vunpack.c.l.b16 %v337
    %v869 = vunpack.c.h.b16 %v337
    %v870 = vunpack.c.l.b16 %v338
    %v871 = vunpack.c.h.b16 %v338
    %v872 = vunpack.c.l.b16 %v339
    %v873 = vunpack.c.h.b16 %v339
    %v874 = vunpack.c.l.b16 %v340
    %v875 = vunpack.c.h.b16 %v340
    %v876 = vunpack.c.l.b16 %v341
    %v877 = vunpack.c.h.b16 %v341
    %v878 = vunpack.c.l.b16 %v342
    %v879 = vunpack.c.h.b16 %v342
    %v880 = vunpack.c.l.b16 %v343
    %v881 = vunpack.c.h.b16 %v343
    %v882 = vunpack.c.l.b16 %v344
    %v883 = vunpack.c.h.b16 %v344
    %v884 = vunpack.c.l.b16 %v345
    %v885 = vunpack.c.h.b16 %v345
    %v886 = vunpack.c.l.b16 %v346
    %v887 = vunpack.c.h.b16 %v346
    %v888 = vunpack.c.l.b16 %v347
    %v889 = vunpack.c.h.b16 %v347
    %v890 = vunpack.c.l.b16 %v348
    %v891 = vunpack.c.h.b16 %v348
    %v892 = vunpack.c.l.b16 %v349
    %v893 = vunpack.c.h.b16 %v349
    %v894 = vunpack.c.l.b16 %v350
    %v895 = vunpack.c.h.b16 %v350
    %v896 = vunpack.c.l.b16 %v351
    %v897 = vunpack.c.h.b16 %v351
    %v898 = vunpack.c.l.b16 %v352
    %v899 = vunpack.c.h.b16 %v352
    %v900 = vunpack.c.l.b16 %v353
    %v901 = vunpack.c.h.b16 %v353
    %v902 = vunpack.c.l.b16 %v354
    %v903 = vunpack.c.h.b16 %v354
    %v904 = vunpack.c.l.b16 %v355
    %v905 = vunpack.c.h.b16 %v355
    %v906 = vunpack.c.l.b16 %v356
    %v907 = vunpack.c.h.b16 %v356
    %v908 = vunpack.c.l.b16 %v357
    %v909 = vunpack.c.h.b16 %v357
    %v910 = vunpack.c.l.b16 %v358
    %v911 = vunpack.c.h.b16 %v358
    %v912 = vunpack.c.l.b16 %v359
    %v913 = vunpack.c.h.b16 %v359
    %v914 = vunpack.c.l.b16 %v360
    %v915 = vunpack.c.h.b16 %v360
    %v916 = vunpack.c.l.b16 %v361
    %v917 = vunpack.c.h.b16 %v361
    %v918 = vunpack.c.l.b16 %v362
    %v919 = vunpack.c.h.b16 %v362
    %v920 = vunpack.c.l.b16 %v363
    %v921 = vunpack.c.h.b16 %v363
    %v922 = vunpack.c.l.b16 %v364
    %v923 = vunpack.c.h.b16 %v364
    %v924 = vunpack.c.l.b16 %v365
    %v925 = vunpack.c.h.b16 %v365
    %v926 = vunpack.c.l.b16 %v366
    %v927 = vunpack.c.h.b16 %v366
    %v928 = vunpack.c.l.b16 %v367
    %v929 = vunpack.c.h.b16 %v367
    %v930 = vunpack.c.l.b16 %v368
    %v931 = vunpack.c.h.b16 %v368
    %v932 = vunpack.c.l.b16 %v369
    %v933 = vunpack.c.h.b16 %v369
    %v934 = vunpack.c.l.b16 %v370
    %v935 = vunpack.c.h.b16 %v370
    %v936 = vunpack.c.l.b16 %v371
    %v937 = vunpack.c.h.b16 %v371
    %v938 = vunpack.c.l.b16 %v372
    %v939 = vunpack.c.h.b16 %v372
    %v940 = vunpack.c.l.b16 %v373
    %v941 = vunpack.c.h.b16 %v373
    %v942 = vunpack.c.l.b16 %v374
    %v943 = vunpack.c.h.b16 %v374
    %v944 = vunpack.c.l.b16 %v375
    %v945 = vunpack.c.h.b16 %v375
    %v946 = vunpack.c.l.b16 %v376
    %v947 = vunpack.c.h.b16 %v376
    %v948 = vunpack.c.l.b16 %v377
    %v949 = vunpack.c.h.b16 %v377
    %v950 = vunpack.c.l.b16 %v378
    %v951 = vunpack.c.h.b16 %v378
    %v952 = vunpack.c.l.b16 %v379
    %v953 = vunpack.c.h.b16 %v379
    %v954 = vunpack.c.l.b16 %v380
    %v955 = vunpack.c.h.b16 %v380
    %v956 = vunpack.c.l.b16 %v381
    %v957 = vunpack.c.h.b16 %v381
    %v958 = vunpack.c.l.b16 %v382
    %v959 = vunpack.c.h.b16 %v382
    %v960 = vunpack.c.l.b16 %v383
    %v961 = vunpack.c.h.b16 %v383
    %v962 = vunpack.c.l.b16 %v384
    %v963 = vunpack.c.h.b16 %v384
    %v964 = vunpack.c.l.b16 %v385
    %v965 = vunpack.c.h.b16 %v385
    %v966 = vunpack.c.l.b16 %v386
    %v967 = vunpack.c.h.b16 %v386
    %v968 = vunpack.c.l.b16 %v387
    %v969 = vunpack.c.h.b16 %v387
    %v970 = vunpack.c.l.b16 %v388
    %v971 = vunpack.c.h.b16 %v388
    %v972 = vunpack.c.l.b16 %v389
    %v973 = vunpack.c.h.b16 %v389
    %v974 = vunpack.c.l.b16 %v390
    %v975 = vunpack.c.h.b16 %v390
    %v976 = vunpack.c.l.b16 %v391
    %v977 = vunpack.c.h.b16 %v391
    %v978 = vunpack.c.l.b16 %v392
    %v979 = vunpack.c.h.b16 %v392
    %v980 = vunpack.c.l.b16 %v393
    %v981 = vunpack.c.h.b16 %v393
    %v982 = vunpack.c.l.b16 %v394
    %v983 = vunpack.c.h.b16 %v394
    %v984 = vunpack.c.l.b16 %v395
    %v985 = vunpack.c.h.b16 %v395
    %v986 = vunpack.c.l.b16 %v396
    %v987 = vunpack.c.h.b16 %v396
    %v988 = vunpack.c.l.b16 %v397
    %v989 = vunpack.c.h.b16 %v397
    %v990 = vunpack.c.l.b16 %v398
    %v991 = vunpack.c.h.b16 %v398
    %v992 = vunpack.c.l.b16 %v399
    %v993 = vunpack.c.h.b16 %v399
    %v994 = vunpack.c.l.b16 %v400
    %v995 = vunpack.c.h.b16 %v400
    %v996 = vunpack.c.l.b16 %v401
    %v997 = vunpack.c.h.b16 %v401
    %v998 = vunpack.c.l.b16 %v402
    %v999 = vunpack.c.h.b16 %v402
    %v1000 = vunpack.c.l.b16 %v403
    %v1001 = vunpack.c.h.b16 %v403
    %v1002 = vpack.c.b16 %v622, %v618
    %v1003 = vpack.c.b16 %v623, %v619
    %v1004 = vpack.c.b16 %v624, %v620
    %v1005 = vpack.c.b16 %v625, %v621
    %v1006 = vpack.c.b16 %v630, %v626
    %v1007 = vpack.c.b16 %v631, %v627
    %v1008 = vpack.c.b16 %v632, %v628
    %v1009 = vpack.c.b16 %v633, %v629
    %v1010 = vpack.c.b16 %v638, %v634
    %v1011 = vpack.c.b16 %v639, %v635
    %v1012 = vpack.c.b16 %v640, %v636
    %v1013 = vpack.c.b16 %v641, %v637
    %v1014 = vpack.c.b16 %v646, %v642
    %v1015 = vpack.c.b16 %v647, %v643
    %v1016 = vpack.c.b16 %v648, %v644
    %v1017 = vpack.c.b16 %v649, %v645
    %v1018 = vpack.c.b16 %v654, %v650
    %v1019 = vpack.c.b16 %v655, %v651
    %v1020 = vpack.c.b16 %v656, %v652
    %v1021 = vpack.c.b16 %v657, %v653
    %v1022 = vpack.c.b16 %v662, %v658
    %v1023 = vpack.c.b16 %v663, %v659
    %v1024 = vpack.c.b16 %v664, %v660
    %v1025 = vpack.c.b16 %v665, %v661
    %v1026 = vpack.c.b16 %v670, %v666
    %v1027 = vpack.c.b16 %v671, %v667
    %v1028 = vpack.c.b16 %v672, %v668
    %v1029 = vpack.c.b16 %v673, %v669
    %v1030 = vpack.c.b16 %v678, %v674
    %v1031 = vpack.c.b16 %v679, %v675
    %v1032 = vpack.c.b16 %v680, %v676
    %v1033 = vpack.c.b16 %v681, %v677
    %v1034 = vpack.c.b16 %v686, %v682
    %v1035 = vpack.c.b16 %v687, %v683
    %v1036 = vpack.c.b16 %v688, %v684
    %v1037 = vpack.c.b16 %v689, %v685
    %v1038 = vpack.c.b16 %v694, %v690
    %v1039 = vpack.c.b16 %v695, %v691
    %v1040 = vpack.c.b16 %v696, %v692
    %v1041 = vpack.c.b16 %v697, %v693
    %v1042 = vpack.c.b16 %v702, %v698
    %v1043 = vpack.c.b16 %v703, %v699
    %v1044 = vpack.c.b16 %v704, %v700
    %v1045 = vpack.c.b16 %v705, %v701
    %v1046 = vpack.c.b16 %v710, %v706
    %v1047 = vpack.c.b16 %v711, %v707
    %v1048 = vpack.c.b16 %v712, %v708
    %v1049 = vpack.c.b16 %v713, %v709
    %v1050 = vpack.c.b16 %v718, %v714
    %v1051 = vpack.c.b16 %v719, %v715
    %v1052 = vpack.c.b16 %v720, %v716
    %v1053 = vpack.c.b16 %v721, %v717
    %v1054 = vpack.c.b16 %v726, %v722
    %v1055 = vpack.c.b16 %v727, %v723
    %v1056 = vpack.c.b16 %v728, %v724
    %v1057 = vpack.c.b16 %v729, %v725
    %v1058 = vpack.c.b16 %v734, %v730
    %v1059 = vpack.c.b16 %v735, %v731
    %v1060 = vpack.c.b16 %v736, %v732
    %v1061 = vpack.c.b16 %v737, %v733
    %v1062 = vpack.c.b16 %v742, %v738
    %v1063 = vpack.c.b16 %v743, %v739
    %v1064 = vpack.c.b16 %v744, %v740
    %v1065 = vpack.c.b16 %v745, %v741
    %v1066 = vpack.c.b16 %v750, %v746
    %v1067 = vpack.c.b16 %v751, %v747
    %v1068 = vpack.c.b16 %v752, %v748
    %v1069 = vpack.c.b16 %v753, %v749
    %v1070 = vpack.c.b16 %v758, %v754
    %v1071 = vpack.c.b16 %v759, %v755
    %v1072 = vpack.c.b16 %v760, %v756
    %v1073 = vpack.c.b16 %v761, %v757
    %v1074 = vpack.c.b16 %v766, %v762
    %v1075 = vpack.c.b16 %v767, %v763
    %v1076 = vpack.c.b16 %v768, %v764
    %v1077 = vpack.c.b16 %v769, %v765
    %v1078 = vpack.c.b16 %v774, %v770
    %v1079 = vpack.c.b16 %v775, %v771
    %v1080 = vpack.c.b16 %v776, %v772
    %v1081 = vpack.c.b16 %v777, %v773
    %v1082 = vpack.c.b16 %v782, %v778
    %v1083 = vpack.c.b16 %v783, %v779
    %v1084 = vpack.c.b16 %v784, %v780
    %v1085 = vpack.c.b16 %v785, %v781
    %v1086 = vpack.c.b16 %v790, %v786
    %v1087 = vpack.c.b16 %v791, %v787
    %v1088 = vpack.c.b16 %v792, %v788
    %v1089 = vpack.c.b16 %v793, %v789
    %v1090 = vpack.c.b16 %v798, %v794
    %v1091 = vpack.c.b16 %v799, %v795
    %v1092 = vpack.c.b16 %v800, %v796
    %v1093 = vpack.c.b16 %v801, %v797
    %v1094 = vpack.c.b16 %v806, %v802
    %v1095 = vpack.c.b16 %v807, %v803
    %v1096 = vpack.c.b16 %v808, %v804
    %v1097 = vpack.c.b16 %v809, %v805
    %v1098 = vpack.c.b16 %v814, %v810
    %v1099 = vpack.c.b16 %v815, %v811
    %v1100 = vpack.c.b16 %v816, %v812
    %v1101 = vpack.c.b16 %v817, %v813
    %v1102 = vpack.c.b16 %v822, %v818
    %v1103 = vpack.c.b16 %v823, %v819
    %v1104 = vpack.c.b16 %v824, %v820
    %v1105 = vpack.c.b16 %v825, %v821
    %v1106 = vpack.c.b16 %v830, %v826
    %v1107 = vpack.c.b16 %v831, %v827
    %v1108 = vpack.c.b16 %v832, %v828
    %v1109 = vpack.c.b16 %v833, %v829
    %v1110 = vpack.c.b16 %v838, %v834
    %v1111 = vpack.c.b16 %v839, %v835
    %v1112 = vpack.c.b16 %v840, %v836
    %v1113 = vpack.c.b16 %v841, %v837
    %v1114 = vpack.c.b16 %v846, %v842
    %v1115 = vpack.c.b16 %v847, %v843
    %v1116 = vpack.c.b16 %v848, %v844
    %v1117 = vpack.c.b16 %v849, %v845
    %v1118 = vpack.c.b16 %v854, %v850
    %v1119 = vpack.c.b16 %v855, %v851
    %v1120 = vpack.c.b16 %v856, %v852
    %v1121 = vpack.c.b16 %v857, %v853
    %v1122 = vpack.c.b16 %v862, %v858
    %v1123 = vpack.c.b16 %v863, %v859
    %v1124 = vpack.c.b16 %v864, %v860
    %v1125 = vpack.c.b16 %v865, %v861
    %v1126 = vpack.c.b16 %v870, %v866
    %v1127 = vpack.c.b16 %v871, %v867
    %v1128 = vpack.c.b16 %v872, %v868
    %v1129 = vpack.c.b16 %v873, %v869
    %v1130 = vpack.c.b16 %v878, %v874
    %v1131 = vpack.c.b16 %v879, %v875
    %v1132 = vpack.c.b16 %v880, %v876
    %v1133 = vpack.c.b16 %v881, %v877
    %v1134 = vpack.c.b16 %v886, %v882
    %v1135 = vpack.c.b16 %v887, %v883
    %v1136 = vpack.c.b16 %v888, %v884
    %v1137 = vpack.c.b16 %v889, %v885
    %v1138 = vpack.c.b16 %v894, %v890
    %v1139 = vpack.c.b16 %v895, %v891
    %v1140 = vpack.c.b16 %v896, %v892
    %v1141 = vpack.c.b16 %v897, %v893
    %v1142 = vpack.c.b16 %v902, %v898
    %v1143 = vpack.c.b16 %v903, %v899
    %v1144 = vpack.c.b16 %v904, %v900
    %v1145 = vpack.c.b16 %v905, %v901
    %v1146 = vpack.c.b16 %v910, %v906
    %v1147 = vpack.c.b16 %v911, %v907
    %v1148 = vpack.c.b16 %v912, %v908
    %v1149 = vpack.c.b16 %v913, %v909
    %v1150 = vpack.c.b16 %v918, %v914
    %v1151 = vpack.c.b16 %v919, %v915
    %v1152 = vpack.c.b16 %v920, %v916
    %v1153 = vpack.c.b16 %v921, %v917
    %v1154 = vpack.c.b16 %v926, %v922
    %v1155 = vpack.c.b16 %v927, %v923
    %v1156 = vpack.c.b16 %v928, %v924
    %v1157 = vpack.c.b16 %v929, %v925
    %v1158 = vpack.c.b16 %v934, %v930
    %v1159 = vpack.c.b16 %v935, %v931
    %v1160 = vpack.c.b16 %v936, %v932
    %v1161 = vpack.c.b16 %v937, %v933
    %v1162 = vpack.c.b16 %v942, %v938
    %v1163 = vpack.c.b16 %v943, %v939
    %v1164 = vpack.c.b16 %v944, %v940
    %v1165 = vpack.c.b16 %v945, %v941
    %v1166 = vpack.c.b16 %v950, %v946
    %v1167 = vpack.c.b16 %v951, %v947
    %v1168 = vpack.c.b16 %v952, %v948
    %v1169 = vpack.c.b16 %v953, %v949
    %v1170 = vpack.c.b16 %v958, %v954
    %v1171 = vpack.c.b16 %v959, %v955
    %v1172 = vpack.c.b16 %v960, %v956
    %v1173 = vpack.c.b16 %v961, %v957
    %v1174 = vpack.c.b16 %v966, %v962
    %v1175 = vpack.c.b16 %v967, %v963
    %v1176 = vpack.c.b16 %v968, %v964
    %v1177 = vpack.c.b16 %v969, %v965
    %v1178 = vpack.c.b16 %v974, %v970
    %v1179 = vpack.c.b16 %v975, %v971
    %v1180 = vpack.c.b16 %v976, %v972
    %v1181 = vpack.c.b16 %v977, %v973
    %v1182 = vpack.c.b16 %v982, %v978
    %v1183 = vpack.c.b16 %v983, %v979
    %v1184 = vpack.c.b16 %v984, %v980
    %v1185 = vpack.c.b16 %v985, %v981
    %v1186 = vpack.c.b16 %v990, %v986
    %v1187 = vpack.c.b16 %v991, %v987
    %v1188 = vpack.c.b16 %v992, %v988
    %v1189 = vpack.c.b16 %v993, %v989
    %v1190 = vpack.c.b16 %v998, %v994
    %v1191 = vpack.c.b16 %v999, %v995
    %v1192 = vpack.c.b16 %v1000, %v996
    %v1193 = vpack.c.b16 %v1001, %v997
    %1386 = vmatprep.subr.bf16.mxu0 %v1003
    %1387 = vmatpush1.bf16.msra.mxu0 %v1002
    %1388 = vmatprep.subr.bf16.mxu0 %v1007
    %1389 = vmatpush1.bf16.msra.mxu0 %v1006
    %1390 = vmatprep.subr.bf16.mxu0 %v1011
    %1391 = vmatpush1.bf16.msra.mxu0 %v1010
    %1392 = vmatprep.subr.bf16.mxu0 %v1015
    %1393 = vmatpush1.bf16.msra.mxu0 %v1014
    %1394 = vmatprep.subr.bf16.mxu0 %v1019
    %1395 = vmatpush1.bf16.msra.mxu0 %v1018
    %1396 = vmatprep.subr.bf16.mxu0 %v1023
    %1397 = vmatpush1.bf16.msra.mxu0 %v1022
    %1398 = vmatprep.subr.bf16.mxu0 %v1027
    %1399 = vmatpush1.bf16.msra.mxu0 %v1026
    %1400 = vmatprep.subr.bf16.mxu0 %v1031
    %1401 = vmatpush1.bf16.msra.mxu0 %v1030
    %1402 = vmatprep.subr.bf16.mxu0 %v1035
    %1403 = vmatpush1.bf16.msra.mxu0 %v1034
    %1404 = vmatprep.subr.bf16.mxu0 %v1039
    %1405 = vmatpush1.bf16.msra.mxu0 %v1038
    %1406 = vmatprep.subr.bf16.mxu0 %v1043
    %1407 = vmatpush1.bf16.msra.mxu0 %v1042
    %1408 = vmatprep.subr.bf16.mxu0 %v1047
    %1409 = vmatpush1.bf16.msra.mxu0 %v1046
    %1410 = vmatprep.subr.bf16.mxu0 %v1051
    %1411 = vmatpush1.bf16.msra.mxu0 %v1050
    %1412 = vmatprep.subr.bf16.mxu0 %v1055
    %1413 = vmatpush1.bf16.msra.mxu0 %v1054
    %1414 = vmatprep.subr.bf16.mxu0 %v1059
    %1415 = vmatpush1.bf16.msra.mxu0 %v1058
    %1416 = vmatprep.subr.bf16.mxu0 %v1063
    %1417 = vmatpush1.bf16.msra.mxu0 %v1062
    %1418 = vmatprep.mubr.bf16.mxu0 %v165
    %1419 = vmatmul.mubr.bf16.gmra.mrb[0].mxu0 %v164
    %v1420 = vpop.f32.mrb[0].mxu0
    %v1421 = vadd.f32 %v409, %v1420
    %v1422 = vpop.f32.mrb[0].mxu0
    %v1423 = vadd.f32 %v413, %v1422
    %v1424 = vpop.f32.mrb[0].mxu0
    %v1425 = vadd.f32 %v409, %v1424
    %v1426 = vpop.f32.mrb[0].mxu0
    %v1427 = vadd.f32 %v413, %v1426
    %1428 = vmatprep.mubr.bf16.mxu0 %v171
    %1429 = vmatmul.mubr.bf16.gmra.mrb[0].mxu0 %v170
    %v1430 = vpop.f32.mrb[0].mxu0
    %v1431 = vadd.f32 %v409, %v1430
    %v1432 = vpop.f32.mrb[0].mxu0
    %v1433 = vadd.f32 %v413, %v1432
    %v1434 = vpop.f32.mrb[0].mxu0
    %v1435 = vadd.f32 %v409, %v1434
    %v1436 = vpop.f32.mrb[0].mxu0
    %v1437 = vadd.f32 %v413, %v1436
    %1438 = vmatprep.mubr.bf16.mxu0 %v177
    %1439 = vmatmul.mubr.bf16.gmra.mrb[0].mxu0 %v176
    %v1440 = vpop.f32.mrb[0].mxu0
    %v1441 = vadd.f32 %v409, %v1440
    %v1442 = vpop.f32.mrb[0].mxu0
    %v1443 = vadd.f32 %v413, %v1442
    %v1444 = vpop.f32.mrb[0].mxu0
    %v1445 = vadd.f32 %v409, %v1444
    %v1446 = vpop.f32.mrb[0].mxu0
    %v1447 = vadd.f32 %v413, %v1446
    %1448 = vmatprep.mubr.bf16.mxu0 %v183
    %1449 = vmatmul.mubr.bf16.gmra.mrb[0].mxu0 %v182
    %v1450 = vpop.f32.mrb[0].mxu0
    %v1451 = vadd.f32 %v409, %v1450
    %v1452 = vpop.f32.mrb[0].mxu0
    %v1453 = vadd.f32 %v413, %v1452
    %v1454 = vpop.f32.mrb[0].mxu0
    %v1455 = vadd.f32 %v409, %v1454
    %v1456 = vpop.f32.mrb[0].mxu0
    %v1457 = vadd.f32 %v413, %v1456
    %1458 = vmatprep.mubr.bf16.mxu0 %v189
    %1459 = vmatmul.mubr.bf16.gmra.mrb[0].mxu0 %v188
    %v1460 = vpop.f32.mrb[0].mxu0
    %v1461 = vadd.f32 %v409, %v1460
    %v1462 = vpop.f32.mrb[0].mxu0
    %v1463 = vadd.f32 %v413, %v1462
    %v1464 = vpop.f32.mrb[0].mxu0
    %v1465 = vadd.f32 %v409, %v1464
    %v1466 = vpop.f32.mrb[0].mxu0
    %v1467 = vadd.f32 %v413, %v1466
    %1468 = vmatprep.mubr.bf16.mxu0 %v195
    %1469 = vmatmul.mubr.bf16.gmra.mrb[0].mxu0 %v194
    %v1470 = vpop.f32.mrb[0].mxu0
    %v1471 = vadd.f32 %v409, %v1470
    %v1472 = vpop.f32.mrb[0].mxu0
    %v1473 = vadd.f32 %v413, %v1472
    %v1474 = vpop.f32.mrb[0].mxu0
    %v1475 = vadd.f32 %v409, %v1474
    %v1476 = vpop.f32.mrb[0].mxu0
    %v1477 = vadd.f32 %v413, %v1476
    %1478 = vmatprep.mubr.bf16.mxu0 %v201
    %1479 = vmatmul.mubr.bf16.gmra.mrb[0].mxu0 %v200
    %v1480 = vpop.f32.mrb[0].mxu0
    %v1481 = vadd.f32 %v409, %v1480
    %v1482 = vpop.f32.mrb[0].mxu0
    %v1483 = vadd.f32 %v413, %v1482
    %v1484 = vpop.f32.mrb[0].mxu0
    %v1485 = vadd.f32 %v409, %v1484
    %v1486 = vpop.f32.mrb[0].mxu0
    %v1487 = vadd.f32 %v413, %v1486
    %1488 = vmatprep.mubr.bf16.mxu0 %v207
    %1489 = vmatmul.mubr.bf16.gmra.mrb[0].mxu0 %v206
    %v1490 = vpop.f32.mrb[0].mxu0
    %v1491 = vadd.f32 %v409, %v1490
    %v1492 = vpop.f32.mrb[0].mxu0
    %v1493 = vadd.f32 %v413, %v1492
    %v1494 = vpop.f32.mrb[0].mxu0
    %v1495 = vadd.f32 %v409, %v1494
    %v1496 = vpop.f32.mrb[0].mxu0
    %v1497 = vadd.f32 %v413, %v1496
    %1498 = vdwg.mxu0
    %1499 = vmatprep.subr.bf16.mxu0 %v1067
    %1500 = vmatpush1.bf16.msra.mxu0 %v1066
    %1501 = vmatprep.subr.bf16.mxu0 %v1071
    %1502 = vmatpush1.bf16.msra.mxu0 %v1070
    %1503 = vmatprep.subr.bf16.mxu0 %v1075
    %1504 = vmatpush1.bf16.msra.mxu0 %v1074
    %1505 = vmatprep.subr.bf16.mxu0 %v1079
    %1506 = vmatpush1.bf16.msra.mxu0 %v1078
    %1507 = vmatprep.subr.bf16.mxu0 %v1083
    %1508 = vmatpush1.bf16.msra.mxu0 %v1082
    %1509 = vmatprep.subr.bf16.mxu0 %v1087
    %1510 = vmatpush1.bf16.msra.mxu0 %v1086
    %1511 = vmatprep.subr.bf16.mxu0 %v1091
    %1512 = vmatpush1.bf16.msra.mxu0 %v1090
    %1513 = vmatprep.subr.bf16.mxu0 %v1095
    %1514 = vmatpush1.bf16.msra.mxu0 %v1094
    %1515 = vmatprep.subr.bf16.mxu0 %v1099
    %1516 = vmatpush1.bf16.msra.mxu0 %v1098
    %1517 = vmatprep.subr.bf16.mxu0 %v1103
    %1518 = vmatpush1.bf16.msra.mxu0 %v1102
    %1519 = vmatprep.subr.bf16.mxu0 %v1107
    %1520 = vmatpush1.bf16.msra.mxu0 %v1106
    %1521 = vmatprep.subr.bf16.mxu0 %v1111
    %1522 = vmatpush1.bf16.msra.mxu0 %v1110
    %1523 = vmatprep.subr.bf16.mxu0 %v1115
    %1524 = vmatpush1.bf16.msra.mxu0 %v1114
    %1525 = vmatprep.subr.bf16.mxu0 %v1119
    %1526 = vmatpush1.bf16.msra.mxu0 %v1118
    %1527 = vmatprep.subr.bf16.mxu0 %v1123
    %1528 = vmatpush1.bf16.msra.mxu0 %v1122
    %1529 = vmatprep.subr.bf16.mxu0 %v1127
    %1530 = vmatpush1.bf16.msra.mxu0 %v1126
    %1531 = vmatprep.mubr.bf16.mxu0 %v167
    %1532 = vmatmul.mubr.bf16.gmra.mrb[0].mxu0 %v166
    %v1533 = vpop.f32.mrb[0].mxu0
    %v1534 = vadd.f32 %v1421, %v1533
    %v1535 = vpop.f32.mrb[0].mxu0
    %v1536 = vadd.f32 %v1423, %v1535
    %v1537 = vpop.f32.mrb[0].mxu0
    %v1538 = vadd.f32 %v1425, %v1537
    %v1539 = vpop.f32.mrb[0].mxu0
    %v1540 = vadd.f32 %v1427, %v1539
    %1541 = vmatprep.mubr.bf16.mxu0 %v173
    %1542 = vmatmul.mubr.bf16.gmra.mrb[0].mxu0 %v172
    %v1543 = vpop.f32.mrb[0].mxu0
    %v1544 = vadd.f32 %v1431, %v1543
    %v1545 = vpop.f32.mrb[0].mxu0
    %v1546 = vadd.f32 %v1433, %v1545
    %v1547 = vpop.f32.mrb[0].mxu0
    %v1548 = vadd.f32 %v1435, %v1547
    %v1549 = vpop.f32.mrb[0].mxu0
    %v1550 = vadd.f32 %v1437, %v1549
    %1551 = vmatprep.mubr.bf16.mxu0 %v179
    %1552 = vmatmul.mubr.bf16.gmra.mrb[0].mxu0 %v178
    %v1553 = vpop.f32.mrb[0].mxu0
    %v1554 = vadd.f32 %v1441, %v1553
    %v1555 = vpop.f32.mrb[0].mxu0
    %v1556 = vadd.f32 %v1443, %v1555
    %v1557 = vpop.f32.mrb[0].mxu0
    %v1558 = vadd.f32 %v1445, %v1557
    %v1559 = vpop.f32.mrb[0].mxu0
    %v1560 = vadd.f32 %v1447, %v1559
    %1561 = vmatprep.mubr.bf16.mxu0 %v185
    %1562 = vmatmul.mubr.bf16.gmra.mrb[0].mxu0 %v184
    %v1563 = vpop.f32.mrb[0].mxu0
    %v1564 = vadd.f32 %v1451, %v1563
    %v1565 = vpop.f32.mrb[0].mxu0
    %v1566 = vadd.f32 %v1453, %v1565
    %v1567 = vpop.f32.mrb[0].mxu0
    %v1568 = vadd.f32 %v1455, %v1567
    %v1569 = vpop.f32.mrb[0].mxu0
    %v1570 = vadd.f32 %v1457, %v1569
    %1571 = vmatprep.mubr.bf16.mxu0 %v191
    %1572 = vmatmul.mubr.bf16.gmra.mrb[0].mxu0 %v190
    %v1573 = vpop.f32.mrb[0].mxu0
    %v1574 = vadd.f32 %v1461, %v1573
    %v1575 = vpop.f32.mrb[0].mxu0
    %v1576 = vadd.f32 %v1463, %v1575
    %v1577 = vpop.f32.mrb[0].mxu0
    %v1578 = vadd.f32 %v1465, %v1577
    %v1579 = vpop.f32.mrb[0].mxu0
    %v1580 = vadd.f32 %v1467, %v1579
    %1581 = vmatprep.mubr.bf16.mxu0 %v197
    %1582 = vmatmul.mubr.bf16.gmra.mrb[0].mxu0 %v196
    %v1583 = vpop.f32.mrb[0].mxu0
    %v1584 = vadd.f32 %v1471, %v1583
    %v1585 = vpop.f32.mrb[0].mxu0
    %v1586 = vadd.f32 %v1473, %v1585
    %v1587 = vpop.f32.mrb[0].mxu0
    %v1588 = vadd.f32 %v1475, %v1587
    %v1589 = vpop.f32.mrb[0].mxu0
    %v1590 = vadd.f32 %v1477, %v1589
    %1591 = vmatprep.mubr.bf16.mxu0 %v203
    %1592 = vmatmul.mubr.bf16.gmra.mrb[0].mxu0 %v202
    %v1593 = vpop.f32.mrb[0].mxu0
    %v1594 = vadd.f32 %v1481, %v1593
    %v1595 = vpop.f32.mrb[0].mxu0
    %v1596 = vadd.f32 %v1483, %v1595
    %v1597 = vpop.f32.mrb[0].mxu0
    %v1598 = vadd.f32 %v1485, %v1597
    %v1599 = vpop.f32.mrb[0].mxu0
    %v1600 = vadd.f32 %v1487, %v1599
    %1601 = vmatprep.mubr.bf16.mxu0 %v209
    %1602 = vmatmul.mubr.bf16.gmra.mrb[0].mxu0 %v208
    %v1603 = vpop.f32.mrb[0].mxu0
    %v1604 = vadd.f32 %v1491, %v1603
    %v1605 = vpop.f32.mrb[0].mxu0
    %v1606 = vadd.f32 %v1493, %v1605
    %v1607 = vpop.f32.mrb[0].mxu0
    %v1608 = vadd.f32 %v1495, %v1607
    %v1609 = vpop.f32.mrb[0].mxu0
    %v1610 = vadd.f32 %v1497, %v1609
    %1611 = vdwg.mxu0
    %1612 = vmatprep.subr.bf16.mxu0 %v1131
    %1613 = vmatpush1.bf16.msra.mxu0 %v1130
    %1614 = vmatprep.subr.bf16.mxu0 %v1135
    %1615 = vmatpush1.bf16.msra.mxu0 %v1134
    %1616 = vmatprep.subr.bf16.mxu0 %v1139
    %1617 = vmatpush1.bf16.msra.mxu0 %v1138
    %1618 = vmatprep.subr.bf16.mxu0 %v1143
    %1619 = vmatpush1.bf16.msra.mxu0 %v1142
    %1620 = vmatprep.subr.bf16.mxu0 %v1147
    %1621 = vmatpush1.bf16.msra.mxu0 %v1146
    %1622 = vmatprep.subr.bf16.mxu0 %v1151
    %1623 = vmatpush1.bf16.msra.mxu0 %v1150
    %1624 = vmatprep.subr.bf16.mxu0 %v1155
    %1625 = vmatpush1.bf16.msra.mxu0 %v1154
    %1626 = vmatprep.subr.bf16.mxu0 %v1159
    %1627 = vmatpush1.bf16.msra.mxu0 %v1158
    %1628 = vmatprep.subr.bf16.mxu0 %v1163
    %1629 = vmatpush1.bf16.msra.mxu0 %v1162
    %1630 = vmatprep.subr.bf16.mxu0 %v1167
    %1631 = vmatpush1.bf16.msra.mxu0 %v1166
    %1632 = vmatprep.subr.bf16.mxu0 %v1171
    %1633 = vmatpush1.bf16.msra.mxu0 %v1170
    %1634 = vmatprep.subr.bf16.mxu0 %v1175
    %1635 = vmatpush1.bf16.msra.mxu0 %v1174
    %1636 = vmatprep.subr.bf16.mxu0 %v1179
    %1637 = vmatpush1.bf16.msra.mxu0 %v1178
    %1638 = vmatprep.subr.bf16.mxu0 %v1183
    %1639 = vmatpush1.bf16.msra.mxu0 %v1182
    %1640 = vmatprep.subr.bf16.mxu0 %v1187
    %1641 = vmatpush1.bf16.msra.mxu0 %v1186
    %1642 = vmatprep.subr.bf16.mxu0 %v1191
    %1643 = vmatpush1.bf16.msra.mxu0 %v1190
    %1644 = vmatprep.mubr.bf16.mxu0 %v169
    %1645 = vmatmul.mubr.bf16.gmra.mrb[0].mxu0 %v168
    %v1646 = vpop.f32.mrb[0].mxu0
    %v1647 = vadd.f32 %v1534, %v1646
    %v1648 = vpop.f32.mrb[0].mxu0
    %v1649 = vadd.f32 %v1536, %v1648
    %v1650 = vpop.f32.mrb[0].mxu0
    %v1651 = vadd.f32 %v1538, %v1650
    %v1652 = vpop.f32.mrb[0].mxu0
    %v1653 = vadd.f32 %v1540, %v1652
    %1654 = vmatprep.mubr.bf16.mxu0 %v175
    %1655 = vmatmul.mubr.bf16.gmra.mrb[0].mxu0 %v174
    %v1656 = vpop.f32.mrb[0].mxu0
    %v1657 = vadd.f32 %v1544, %v1656
    %v1658 = vpop.f32.mrb[0].mxu0
    %v1659 = vadd.f32 %v1546, %v1658
    %v1660 = vpop.f32.mrb[0].mxu0
    %v1661 = vadd.f32 %v1548, %v1660
    %v1662 = vpop.f32.mrb[0].mxu0
    %v1663 = vadd.f32 %v1550, %v1662
    %1664 = vmatprep.mubr.bf16.mxu0 %v181
    %1665 = vmatmul.mubr.bf16.gmra.mrb[0].mxu0 %v180
    %v1666 = vpop.f32.mrb[0].mxu0
    %v1667 = vadd.f32 %v1554, %v1666
    %v1668 = vpop.f32.mrb[0].mxu0
    %v1669 = vadd.f32 %v1556, %v1668
    %v1670 = vpop.f32.mrb[0].mxu0
    %v1671 = vadd.f32 %v1558, %v1670
    %v1672 = vpop.f32.mrb[0].mxu0
    %v1673 = vadd.f32 %v1560, %v1672
    %1674 = vmatprep.mubr.bf16.mxu0 %v187
    %1675 = vmatmul.mubr.bf16.gmra.mrb[0].mxu0 %v186
    %v1676 = vpop.f32.mrb[0].mxu0
    %v1677 = vadd.f32 %v1564, %v1676
    %v1678 = vpop.f32.mrb[0].mxu0
    %v1679 = vadd.f32 %v1566, %v1678
    %v1680 = vpop.f32.mrb[0].mxu0
    %v1681 = vadd.f32 %v1568, %v1680
    %v1682 = vpop.f32.mrb[0].mxu0
    %v1683 = vadd.f32 %v1570, %v1682
    %1684 = vmatprep.mubr.bf16.mxu0 %v193
    %1685 = vmatmul.mubr.bf16.gmra.mrb[0].mxu0 %v192
    %v1686 = vpop.f32.mrb[0].mxu0
    %v1687 = vadd.f32 %v1574, %v1686
    %v1688 = vpop.f32.mrb[0].mxu0
    %v1689 = vadd.f32 %v1576, %v1688
    %v1690 = vpop.f32.mrb[0].mxu0
    %v1691 = vadd.f32 %v1578, %v1690
    %v1692 = vpop.f32.mrb[0].mxu0
    %v1693 = vadd.f32 %v1580, %v1692
    %1694 = vmatprep.mubr.bf16.mxu0 %v199
    %1695 = vmatmul.mubr.bf16.gmra.mrb[0].mxu0 %v198
    %v1696 = vpop.f32.mrb[0].mxu0
    %v1697 = vadd.f32 %v1584, %v1696
    %v1698 = vpop.f32.mrb[0].mxu0
    %v1699 = vadd.f32 %v1586, %v1698
    %v1700 = vpop.f32.mrb[0].mxu0
    %v1701 = vadd.f32 %v1588, %v1700
    %v1702 = vpop.f32.mrb[0].mxu0
    %v1703 = vadd.f32 %v1590, %v1702
    %1704 = vmatprep.mubr.bf16.mxu0 %v205
    %1705 = vmatmul.mubr.bf16.gmra.mrb[0].mxu0 %v204
    %v1706 = vpop.f32.mrb[0].mxu0
    %v1707 = vadd.f32 %v1594, %v1706
    %v1708 = vpop.f32.mrb[0].mxu0
    %v1709 = vadd.f32 %v1596, %v1708
    %v1710 = vpop.f32.mrb[0].mxu0
    %v1711 = vadd.f32 %v1598, %v1710
    %v1712 = vpop.f32.mrb[0].mxu0
    %v1713 = vadd.f32 %v1600, %v1712
    %1714 = vmatprep.mubr.bf16.mxu0 %v211
    %1715 = vmatmul.mubr.bf16.gmra.mrb[0].mxu0 %v210
    %v1716 = vpop.f32.mrb[0].mxu0
    %v1717 = vadd.f32 %v1604, %v1716
    %v1718 = vpop.f32.mrb[0].mxu0
    %v1719 = vadd.f32 %v1606, %v1718
    %v1720 = vpop.f32.mrb[0].mxu0
    %v1721 = vadd.f32 %v1608, %v1720
    %v1722 = vpop.f32.mrb[0].mxu0
    %v1723 = vadd.f32 %v1610, %v1722
    %1724 = vdwg.mxu0
    %1725 = vmatprep.subr.bf16.mxu0 %v1005
    %1726 = vmatpush1.bf16.msra.mxu0 %v1004
    %1727 = vmatprep.subr.bf16.mxu0 %v1009
    %1728 = vmatpush1.bf16.msra.mxu0 %v1008
    %1729 = vmatprep.subr.bf16.mxu0 %v1013
    %1730 = vmatpush1.bf16.msra.mxu0 %v1012
    %1731 = vmatprep.subr.bf16.mxu0 %v1017
    %1732 = vmatpush1.bf16.msra.mxu0 %v1016
    %1733 = vmatprep.subr.bf16.mxu0 %v1021
    %1734 = vmatpush1.bf16.msra.mxu0 %v1020
    %1735 = vmatprep.subr.bf16.mxu0 %v1025
    %1736 = vmatpush1.bf16.msra.mxu0 %v1024
    %1737 = vmatprep.subr.bf16.mxu0 %v1029
    %1738 = vmatpush1.bf16.msra.mxu0 %v1028
    %1739 = vmatprep.subr.bf16.mxu0 %v1033
    %1740 = vmatpush1.bf16.msra.mxu0 %v1032
    %1741 = vmatprep.subr.bf16.mxu0 %v1037
    %1742 = vmatpush1.bf16.msra.mxu0 %v1036
    %1743 = vmatprep.subr.bf16.mxu0 %v1041
    %1744 = vmatpush1.bf16.msra.mxu0 %v1040
    %1745 = vmatprep.subr.bf16.mxu0 %v1045
    %1746 = vmatpush1.bf16.msra.mxu0 %v1044
    %1747 = vmatprep.subr.bf16.mxu0 %v1049
    %1748 = vmatpush1.bf16.msra.mxu0 %v1048
    %1749 = vmatprep.subr.bf16.mxu0 %v1053
    %1750 = vmatpush1.bf16.msra.mxu0 %v1052
    %1751 = vmatprep.subr.bf16.mxu0 %v1057
    %1752 = vmatpush1.bf16.msra.mxu0 %v1056
    %1753 = vmatprep.subr.bf16.mxu0 %v1061
    %1754 = vmatpush1.bf16.msra.mxu0 %v1060
    %1755 = vmatprep.subr.bf16.mxu0 %v1065
    %1756 = vmatpush1.bf16.msra.mxu0 %v1064
    %1757 = vmatprep.mubr.bf16.mxu0 %v165
    %1758 = vmatmul.mubr.bf16.gmra.mrb[0].mxu0 %v164
    %v1759 = vpop.f32.mrb[0].mxu0
    %v1760 = vadd.f32 %v417, %v1759
    %v1761 = vpop.f32.mrb[0].mxu0
    %v1762 = vadd.f32 %v421, %v1761
    %v1763 = vpop.f32.mrb[0].mxu0
    %v1764 = vadd.f32 %v417, %v1763
    %v1765 = vpop.f32.mrb[0].mxu0
    %v1766 = vadd.f32 %v421, %v1765
    %1767 = vmatprep.mubr.bf16.mxu0 %v171
    %1768 = vmatmul.mubr.bf16.gmra.mrb[0].mxu0 %v170
    %v1769 = vpop.f32.mrb[0].mxu0
    %v1770 = vadd.f32 %v417, %v1769
    %v1771 = vpop.f32.mrb[0].mxu0
    %v1772 = vadd.f32 %v421, %v1771
    %v1773 = vpop.f32.mrb[0].mxu0
    %v1774 = vadd.f32 %v417, %v1773
    %v1775 = vpop.f32.mrb[0].mxu0
    %v1776 = vadd.f32 %v421, %v1775
    %1777 = vmatprep.mubr.bf16.mxu0 %v177
    %1778 = vmatmul.mubr.bf16.gmra.mrb[0].mxu0 %v176
    %v1779 = vpop.f32.mrb[0].mxu0
    %v1780 = vadd.f32 %v417, %v1779
    %v1781 = vpop.f32.mrb[0].mxu0
    %v1782 = vadd.f32 %v421, %v1781
    %v1783 = vpop.f32.mrb[0].mxu0
    %v1784 = vadd.f32 %v417, %v1783
    %v1785 = vpop.f32.mrb[0].mxu0
    %v1786 = vadd.f32 %v421, %v1785
    %1787 = vmatprep.mubr.bf16.mxu0 %v183
    %1788 = vmatmul.mubr.bf16.gmra.mrb[0].mxu0 %v182
    %v1789 = vpop.f32.mrb[0].mxu0
    %v1790 = vadd.f32 %v417, %v1789
    %v1791 = vpop.f32.mrb[0].mxu0
    %v1792 = vadd.f32 %v421, %v1791
    %v1793 = vpop.f32.mrb[0].mxu0
    %v1794 = vadd.f32 %v417, %v1793
    %v1795 = vpop.f32.mrb[0].mxu0
    %v1796 = vadd.f32 %v421, %v1795
    %1797 = vmatprep.mubr.bf16.mxu0 %v189
    %1798 = vmatmul.mubr.bf16.gmra.mrb[0].mxu0 %v188
    %v1799 = vpop.f32.mrb[0].mxu0
    %v1800 = vadd.f32 %v417, %v1799
    %v1801 = vpop.f32.mrb[0].mxu0
    %v1802 = vadd.f32 %v421, %v1801
    %v1803 = vpop.f32.mrb[0].mxu0
    %v1804 = vadd.f32 %v417, %v1803
    %v1805 = vpop.f32.mrb[0].mxu0
    %v1806 = vadd.f32 %v421, %v1805
    %1807 = vmatprep.mubr.bf16.mxu0 %v195
    %1808 = vmatmul.mubr.bf16.gmra.mrb[0].mxu0 %v194
    %v1809 = vpop.f32.mrb[0].mxu0
    %v1810 = vadd.f32 %v417, %v1809
    %v1811 = vpop.f32.mrb[0].mxu0
    %v1812 = vadd.f32 %v421, %v1811
    %v1813 = vpop.f32.mrb[0].mxu0
    %v1814 = vadd.f32 %v417, %v1813
    %v1815 = vpop.f32.mrb[0].mxu0
    %v1816 = vadd.f32 %v421, %v1815
    %1817 = vmatprep.mubr.bf16.mxu0 %v201
    %1818 = vmatmul.mubr.bf16.gmra.mrb[0].mxu0 %v200
    %v1819 = vpop.f32.mrb[0].mxu0
    %v1820 = vadd.f32 %v417, %v1819
    %v1821 = vpop.f32.mrb[0].mxu0
    %v1822 = vadd.f32 %v421, %v1821
    %v1823 = vpop.f32.mrb[0].mxu0
    %v1824 = vadd.f32 %v417, %v1823
    %v1825 = vpop.f32.mrb[0].mxu0
    %v1826 = vadd.f32 %v421, %v1825
    %1827 = vmatprep.mubr.bf16.mxu0 %v207
    %1828 = vmatmul.mubr.bf16.gmra.mrb[0].mxu0 %v206
    %v1829 = vpop.f32.mrb[0].mxu0
    %v1830 = vadd.f32 %v417, %v1829
    %v1831 = vpop.f32.mrb[0].mxu0
    %v1832 = vadd.f32 %v421, %v1831
    %v1833 = vpop.f32.mrb[0].mxu0
    %v1834 = vadd.f32 %v417, %v1833
    %v1835 = vpop.f32.mrb[0].mxu0
    %v1836 = vadd.f32 %v421, %v1835
    %1837 = vdwg.mxu0
    %1838 = vmatprep.subr.bf16.mxu0 %v1069
    %1839 = vmatpush1.bf16.msra.mxu0 %v1068
    %1840 = vmatprep.subr.bf16.mxu0 %v1073
    %1841 = vmatpush1.bf16.msra.mxu0 %v1072
    %1842 = vmatprep.subr.bf16.mxu0 %v1077
    %1843 = vmatpush1.bf16.msra.mxu0 %v1076
    %1844 = vmatprep.subr.bf16.mxu0 %v1081
    %1845 = vmatpush1.bf16.msra.mxu0 %v1080
    %1846 = vmatprep.subr.bf16.mxu0 %v1085
    %1847 = vmatpush1.bf16.msra.mxu0 %v1084
    %1848 = vmatprep.subr.bf16.mxu0 %v1089
    %1849 = vmatpush1.bf16.msra.mxu0 %v1088
    %1850 = vmatprep.subr.bf16.mxu0 %v1093
    %1851 = vmatpush1.bf16.msra.mxu0 %v1092
    %1852 = vmatprep.subr.bf16.mxu0 %v1097
    %1853 = vmatpush1.bf16.msra.mxu0 %v1096
    %1854 = vmatprep.subr.bf16.mxu0 %v1101
    %1855 = vmatpush1.bf16.msra.mxu0 %v1100
    %1856 = vmatprep.subr.bf16.mxu0 %v1105
    %1857 = vmatpush1.bf16.msra.mxu0 %v1104
    %1858 = vmatprep.subr.bf16.mxu0 %v1109
    %1859 = vmatpush1.bf16.msra.mxu0 %v1108
    %1860 = vmatprep.subr.bf16.mxu0 %v1113
    %1861 = vmatpush1.bf16.msra.mxu0 %v1112
    %1862 = vmatprep.subr.bf16.mxu0 %v1117
    %1863 = vmatpush1.bf16.msra.mxu0 %v1116
    %1864 = vmatprep.subr.bf16.mxu0 %v1121
    %1865 = vmatpush1.bf16.msra.mxu0 %v1120
    %1866 = vmatprep.subr.bf16.mxu0 %v1125
    %1867 = vmatpush1.bf16.msra.mxu0 %v1124
    %1868 = vmatprep.subr.bf16.mxu0 %v1129
    %1869 = vmatpush1.bf16.msra.mxu0 %v1128
    %1870 = vmatprep.mubr.bf16.mxu0 %v167
    %1871 = vmatmul.mubr.bf16.gmra.mrb[0].mxu0 %v166
    %v1872 = vpop.f32.mrb[0].mxu0
    %v1873 = vadd.f32 %v1760, %v1872
    %v1874 = vpop.f32.mrb[0].mxu0
    %v1875 = vadd.f32 %v1762, %v1874
    %v1876 = vpop.f32.mrb[0].mxu0
    %v1877 = vadd.f32 %v1764, %v1876
    %v1878 = vpop.f32.mrb[0].mxu0
    %v1879 = vadd.f32 %v1766, %v1878
    %1880 = vmatprep.mubr.bf16.mxu0 %v173
    %1881 = vmatmul.mubr.bf16.gmra.mrb[0].mxu0 %v172
    %v1882 = vpop.f32.mrb[0].mxu0
    %v1883 = vadd.f32 %v1770, %v1882
    %v1884 = vpop.f32.mrb[0].mxu0
    %v1885 = vadd.f32 %v1772, %v1884
    %v1886 = vpop.f32.mrb[0].mxu0
    %v1887 = vadd.f32 %v1774, %v1886
    %v1888 = vpop.f32.mrb[0].mxu0
    %v1889 = vadd.f32 %v1776, %v1888
    %1890 = vmatprep.mubr.bf16.mxu0 %v179
    %1891 = vmatmul.mubr.bf16.gmra.mrb[0].mxu0 %v178
    %v1892 = vpop.f32.mrb[0].mxu0
    %v1893 = vadd.f32 %v1780, %v1892
    %v1894 = vpop.f32.mrb[0].mxu0
    %v1895 = vadd.f32 %v1782, %v1894
    %v1896 = vpop.f32.mrb[0].mxu0
    %v1897 = vadd.f32 %v1784, %v1896
    %v1898 = vpop.f32.mrb[0].mxu0
    %v1899 = vadd.f32 %v1786, %v1898
    %1900 = vmatprep.mubr.bf16.mxu0 %v185
    %1901 = vmatmul.mubr.bf16.gmra.mrb[0].mxu0 %v184
    %v1902 = vpop.f32.mrb[0].mxu0
    %v1903 = vadd.f32 %v1790, %v1902
    %v1904 = vpop.f32.mrb[0].mxu0
    %v1905 = vadd.f32 %v1792, %v1904
    %v1906 = vpop.f32.mrb[0].mxu0
    %v1907 = vadd.f32 %v1794, %v1906
    %v1908 = vpop.f32.mrb[0].mxu0
    %v1909 = vadd.f32 %v1796, %v1908
    %1910 = vmatprep.mubr.bf16.mxu0 %v191
    %1911 = vmatmul.mubr.bf16.gmra.mrb[0].mxu0 %v190
    %v1912 = vpop.f32.mrb[0].mxu0
    %v1913 = vadd.f32 %v1800, %v1912
    %v1914 = vpop.f32.mrb[0].mxu0
    %v1915 = vadd.f32 %v1802, %v1914
    %v1916 = vpop.f32.mrb[0].mxu0
    %v1917 = vadd.f32 %v1804, %v1916
    %v1918 = vpop.f32.mrb[0].mxu0
    %v1919 = vadd.f32 %v1806, %v1918
    %1920 = vmatprep.mubr.bf16.mxu0 %v197
    %1921 = vmatmul.mubr.bf16.gmra.mrb[0].mxu0 %v196
    %v1922 = vpop.f32.mrb[0].mxu0
    %v1923 = vadd.f32 %v1810, %v1922
    %v1924 = vpop.f32.mrb[0].mxu0
    %v1925 = vadd.f32 %v1812, %v1924
    %v1926 = vpop.f32.mrb[0].mxu0
    %v1927 = vadd.f32 %v1814, %v1926
    %v1928 = vpop.f32.mrb[0].mxu0
    %v1929 = vadd.f32 %v1816, %v1928
    %1930 = vmatprep.mubr.bf16.mxu0 %v203
    %1931 = vmatmul.mubr.bf16.gmra.mrb[0].mxu0 %v202
    %v1932 = vpop.f32.mrb[0].mxu0
    %v1933 = vadd.f32 %v1820, %v1932
    %v1934 = vpop.f32.mrb[0].mxu0
    %v1935 = vadd.f32 %v1822, %v1934
    %v1936 = vpop.f32.mrb[0].mxu0
    %v1937 = vadd.f32 %v1824, %v1936
    %v1938 = vpop.f32.mrb[0].mxu0
    %v1939 = vadd.f32 %v1826, %v1938
    %1940 = vmatprep.mubr.bf16.mxu0 %v209
    %1941 = vmatmul.mubr.bf16.gmra.mrb[0].mxu0 %v208
    %v1942 = vpop.f32.mrb[0].mxu0
    %v1943 = vadd.f32 %v1830, %v1942
    %v1944 = vpop.f32.mrb[0].mxu0
    %v1945 = vadd.f32 %v1832, %v1944
    %v1946 = vpop.f32.mrb[0].mxu0
    %v1947 = vadd.f32 %v1834, %v1946
    %v1948 = vpop.f32.mrb[0].mxu0
    %v1949 = vadd.f32 %v1836, %v1948
    %1950 = vdwg.mxu0
    %1951 = vmatprep.subr.bf16.mxu0 %v1133
    %1952 = vmatpush1.bf16.msra.mxu0 %v1132
    %1953 = vmatprep.subr.bf16.mxu0 %v1137
    %1954 = vmatpush1.bf16.msra.mxu0 %v1136
    %1955 = vmatprep.subr.bf16.mxu0 %v1141
    %1956 = vmatpush1.bf16.msra.mxu0 %v1140
    %1957 = vmatprep.subr.bf16.mxu0 %v1145
    %1958 = vmatpush1.bf16.msra.mxu0 %v1144
    %1959 = vmatprep.subr.bf16.mxu0 %v1149
    %1960 = vmatpush1.bf16.msra.mxu0 %v1148
    %1961 = vmatprep.subr.bf16.mxu0 %v1153
    %1962 = vmatpush1.bf16.msra.mxu0 %v1152
    %1963 = vmatprep.subr.bf16.mxu0 %v1157
    %1964 = vmatpush1.bf16.msra.mxu0 %v1156
    %1965 = vmatprep.subr.bf16.mxu0 %v1161
    %1966 = vmatpush1.bf16.msra.mxu0 %v1160
    %1967 = vmatprep.subr.bf16.mxu0 %v1165
    %1968 = vmatpush1.bf16.msra.mxu0 %v1164
    %1969 = vmatprep.subr.bf16.mxu0 %v1169
    %1970 = vmatpush1.bf16.msra.mxu0 %v1168
    %1971 = vmatprep.subr.bf16.mxu0 %v1173
    %1972 = vmatpush1.bf16.msra.mxu0 %v1172
    %1973 = vmatprep.subr.bf16.mxu0 %v1177
    %1974 = vmatpush1.bf16.msra.mxu0 %v1176
    %1975 = vmatprep.subr.bf16.mxu0 %v1181
    %1976 = vmatpush1.bf16.msra.mxu0 %v1180
    %1977 = vmatprep.subr.bf16.mxu0 %v1185
    %1978 = vmatpush1.bf16.msra.mxu0 %v1184
    %1979 = vmatprep.subr.bf16.mxu0 %v1189
    %1980 = vmatpush1.bf16.msra.mxu0 %v1188
    %1981 = vmatprep.subr.bf16.mxu0 %v1193
    %1982 = vmatpush1.bf16.msra.mxu0 %v1192
    %1983 = vmatprep.mubr.bf16.mxu0 %v169
    %1984 = vmatmul.mubr.bf16.gmra.mrb[0].mxu0 %v168
    %v1985 = vpop.f32.mrb[0].mxu0
    %v1986 = vadd.f32 %v1873, %v1985
    %v1987 = vpop.f32.mrb[0].mxu0
    %v1988 = vadd.f32 %v1875, %v1987
    %v1989 = vpop.f32.mrb[0].mxu0
    %v1990 = vadd.f32 %v1877, %v1989
    %v1991 = vpop.f32.mrb[0].mxu0
    %v1992 = vadd.f32 %v1879, %v1991
    %1993 = vmatprep.mubr.bf16.mxu0 %v175
    %1994 = vmatmul.mubr.bf16.gmra.mrb[0].mxu0 %v174
    %v1995 = vpop.f32.mrb[0].mxu0
    %v1996 = vadd.f32 %v1883, %v1995
    %v1997 = vpop.f32.mrb[0].mxu0
    %v1998 = vadd.f32 %v1885, %v1997
    %v1999 = vpop.f32.mrb[0].mxu0
    %v2000 = vadd.f32 %v1887, %v1999
    %v2001 = vpop.f32.mrb[0].mxu0
    %v2002 = vadd.f32 %v1889, %v2001
    %2003 = vmatprep.mubr.bf16.mxu0 %v181
    %2004 = vmatmul.mubr.bf16.gmra.mrb[0].mxu0 %v180
    %v2005 = vpop.f32.mrb[0].mxu0
    %v2006 = vadd.f32 %v1893, %v2005
    %v2007 = vpop.f32.mrb[0].mxu0
    %v2008 = vadd.f32 %v1895, %v2007
    %v2009 = vpop.f32.mrb[0].mxu0
    %v2010 = vadd.f32 %v1897, %v2009
    %v2011 = vpop.f32.mrb[0].mxu0
    %v2012 = vadd.f32 %v1899, %v2011
    %2013 = vmatprep.mubr.bf16.mxu0 %v187
    %2014 = vmatmul.mubr.bf16.gmra.mrb[0].mxu0 %v186
    %v2015 = vpop.f32.mrb[0].mxu0
    %v2016 = vadd.f32 %v1903, %v2015
    %v2017 = vpop.f32.mrb[0].mxu0
    %v2018 = vadd.f32 %v1905, %v2017
    %v2019 = vpop.f32.mrb[0].mxu0
    %v2020 = vadd.f32 %v1907, %v2019
    %v2021 = vpop.f32.mrb[0].mxu0
    %v2022 = vadd.f32 %v1909, %v2021
    %2023 = vmatprep.mubr.bf16.mxu0 %v193
    %2024 = vmatmul.mubr.bf16.gmra.mrb[0].mxu0 %v192
    %v2025 = vpop.f32.mrb[0].mxu0
    %v2026 = vadd.f32 %v1913, %v2025
    %v2027 = vpop.f32.mrb[0].mxu0
    %v2028 = vadd.f32 %v1915, %v2027
    %v2029 = vpop.f32.mrb[0].mxu0
    %v2030 = vadd.f32 %v1917, %v2029
    %v2031 = vpop.f32.mrb[0].mxu0
    %v2032 = vadd.f32 %v1919, %v2031
    %2033 = vmatprep.mubr.bf16.mxu0 %v199
    %2034 = vmatmul.mubr.bf16.gmra.mrb[0].mxu0 %v198
    %v2035 = vpop.f32.mrb[0].mxu0
    %v2036 = vadd.f32 %v1923, %v2035
    %v2037 = vpop.f32.mrb[0].mxu0
    %v2038 = vadd.f32 %v1925, %v2037
    %v2039 = vpop.f32.mrb[0].mxu0
    %v2040 = vadd.f32 %v1927, %v2039
    %v2041 = vpop.f32.mrb[0].mxu0
    %v2042 = vadd.f32 %v1929, %v2041
    %2043 = vmatprep.mubr.bf16.mxu0 %v205
    %2044 = vmatmul.mubr.bf16.gmra.mrb[0].mxu0 %v204
    %v2045 = vpop.f32.mrb[0].mxu0
    %v2046 = vadd.f32 %v1933, %v2045
    %v2047 = vpop.f32.mrb[0].mxu0
    %v2048 = vadd.f32 %v1935, %v2047
    %v2049 = vpop.f32.mrb[0].mxu0
    %v2050 = vadd.f32 %v1937, %v2049
    %v2051 = vpop.f32.mrb[0].mxu0
    %v2052 = vadd.f32 %v1939, %v2051
    %2053 = vmatprep.mubr.bf16.mxu0 %v211
    %2054 = vmatmul.mubr.bf16.gmra.mrb[0].mxu0 %v210
    %v2055 = vpop.f32.mrb[0].mxu0
    %v2056 = vadd.f32 %v1943, %v2055
    %v2057 = vpop.f32.mrb[0].mxu0
    %v2058 = vadd.f32 %v1945, %v2057
    %v2059 = vpop.f32.mrb[0].mxu0
    %v2060 = vadd.f32 %v1947, %v2059
    %v2061 = vpop.f32.mrb[0].mxu0
    %v2062 = vadd.f32 %v1949, %v2061
    %2063 = vdwg.mxu0
    %v2064 = vmax.f32 %v1647, 0.0
    %v2065 = vmax.f32 %v1649, 0.0
    %v2066 = vmax.f32 %v1986, 0.0
    %v2067 = vmax.f32 %v1988, 0.0
    %v2068 = vmax.f32 %v1651, 0.0
    %v2069 = vmax.f32 %v1653, 0.0
    %v2070 = vmax.f32 %v1990, 0.0
    %v2071 = vmax.f32 %v1992, 0.0
    %v2072 = vmax.f32 %v1657, 0.0
    %v2073 = vmax.f32 %v1659, 0.0
    %v2074 = vmax.f32 %v1996, 0.0
    %v2075 = vmax.f32 %v1998, 0.0
    %v2076 = vmax.f32 %v1661, 0.0
    %v2077 = vmax.f32 %v1663, 0.0
    %v2078 = vmax.f32 %v2000, 0.0
    %v2079 = vmax.f32 %v2002, 0.0
    %v2080 = vmax.f32 %v1667, 0.0
    %v2081 = vmax.f32 %v1669, 0.0
    %v2082 = vmax.f32 %v2006, 0.0
    %v2083 = vmax.f32 %v2008, 0.0
    %v2084 = vmax.f32 %v1671, 0.0
    %v2085 = vmax.f32 %v1673, 0.0
    %v2086 = vmax.f32 %v2010, 0.0
    %v2087 = vmax.f32 %v2012, 0.0
    %v2088 = vmax.f32 %v1677, 0.0
    %v2089 = vmax.f32 %v1679, 0.0
    %v2090 = vmax.f32 %v2016, 0.0
    %v2091 = vmax.f32 %v2018, 0.0
    %v2092 = vmax.f32 %v1681, 0.0
    %v2093 = vmax.f32 %v1683, 0.0
    %v2094 = vmax.f32 %v2020, 0.0
    %v2095 = vmax.f32 %v2022, 0.0
    %v2096 = vmax.f32 %v1687, 0.0
    %v2097 = vmax.f32 %v1689, 0.0
    %v2098 = vmax.f32 %v2026, 0.0
    %v2099 = vmax.f32 %v2028, 0.0
    %v2100 = vmax.f32 %v1691, 0.0
    %v2101 = vmax.f32 %v1693, 0.0
    %v2102 = vmax.f32 %v2030, 0.0
    %v2103 = vmax.f32 %v2032, 0.0
    %v2104 = vmax.f32 %v1697, 0.0
    %v2105 = vmax.f32 %v1699, 0.0
    %v2106 = vmax.f32 %v2036, 0.0
    %v2107 = vmax.f32 %v2038, 0.0
    %v2108 = vmax.f32 %v1701, 0.0
    %v2109 = vmax.f32 %v1703, 0.0
    %v2110 = vmax.f32 %v2040, 0.0
    %v2111 = vmax.f32 %v2042, 0.0
    %v2112 = vmax.f32 %v1707, 0.0
    %v2113 = vmax.f32 %v1709, 0.0
    %v2114 = vmax.f32 %v2046, 0.0
    %v2115 = vmax.f32 %v2048, 0.0
    %v2116 = vmax.f32 %v1711, 0.0
    %v2117 = vmax.f32 %v1713, 0.0
    %v2118 = vmax.f32 %v2050, 0.0
    %v2119 = vmax.f32 %v2052, 0.0
    %v2120 = vmax.f32 %v1717, 0.0
    %v2121 = vmax.f32 %v1719, 0.0
    %v2122 = vmax.f32 %v2056, 0.0
    %v2123 = vmax.f32 %v2058, 0.0
    %v2124 = vmax.f32 %v1721, 0.0
    %v2125 = vmax.f32 %v1723, 0.0
    %v2126 = vmax.f32 %v2060, 0.0
    %v2127 = vmax.f32 %v2062, 0.0
    %v2128 = vpack.c.bf16 %v2068, %v2064
    %v2129 = vpack.c.bf16 %v2069, %v2065
    %v2130 = vpack.c.bf16 %v2070, %v2066
    %v2131 = vpack.c.bf16 %v2071, %v2067
    %v2132 = vpack.c.bf16 %v2076, %v2072
    %v2133 = vpack.c.bf16 %v2077, %v2073
    %v2134 = vpack.c.bf16 %v2078, %v2074
    %v2135 = vpack.c.bf16 %v2079, %v2075
    %v2136 = vpack.c.bf16 %v2084, %v2080
    %v2137 = vpack.c.bf16 %v2085, %v2081
    %v2138 = vpack.c.bf16 %v2086, %v2082
    %v2139 = vpack.c.bf16 %v2087, %v2083
    %v2140 = vpack.c.bf16 %v2092, %v2088
    %v2141 = vpack.c.bf16 %v2093, %v2089
    %v2142 = vpack.c.bf16 %v2094, %v2090
    %v2143 = vpack.c.bf16 %v2095, %v2091
    %v2144 = vpack.c.bf16 %v2100, %v2096
    %v2145 = vpack.c.bf16 %v2101, %v2097
    %v2146 = vpack.c.bf16 %v2102, %v2098
    %v2147 = vpack.c.bf16 %v2103, %v2099
    %v2148 = vpack.c.bf16 %v2108, %v2104
    %v2149 = vpack.c.bf16 %v2109, %v2105
    %v2150 = vpack.c.bf16 %v2110, %v2106
    %v2151 = vpack.c.bf16 %v2111, %v2107
    %v2152 = vpack.c.bf16 %v2116, %v2112
    %v2153 = vpack.c.bf16 %v2117, %v2113
    %v2154 = vpack.c.bf16 %v2118, %v2114
    %v2155 = vpack.c.bf16 %v2119, %v2115
    %v2156 = vpack.c.bf16 %v2124, %v2120
    %v2157 = vpack.c.bf16 %v2125, %v2121
    %v2158 = vpack.c.bf16 %v2126, %v2122
    %v2159 = vpack.c.bf16 %v2127, %v2123
    %v2160 = vld [vmem:[#allocation7] sm:$0xff]
    %v2161 = vld [vmem:[#allocation7 + $0x8] sm:$0xff]
    %v2162 = vld [vmem:[#allocation7 + $0x10] sm:$0xff]
    %v2163 = vld [vmem:[#allocation7 + $0x18] sm:$0xff]
    %v2164 = vld [vmem:[#allocation7 + $0x20] sm:$0xff]
    %v2165 = vld [vmem:[#allocation7 + $0x28] sm:$0xff]
    %v2166 = vld [vmem:[#allocation7 + $0x30] sm:$0xff]
    %v2167 = vld [vmem:[#allocation7 + $0x38] sm:$0xff]
    %v2168 = vld [vmem:[#allocation7 + $0x40] sm:$0xff]
    %v2169 = vld [vmem:[#allocation7 + $0x48] sm:$0xff]
    %v2170 = vld [vmem:[#allocation7 + $0x50] sm:$0xff]
    %v2171 = vld [vmem:[#allocation7 + $0x58] sm:$0xff]
    %v2172 = vld [vmem:[#allocation7 + $0x60] sm:$0xff]
    %v2173 = vld [vmem:[#allocation7 + $0x68] sm:$0xff]
    %v2174 = vld [vmem:[#allocation7 + $0x70] sm:$0xff]
    %v2175 = vld [vmem:[#allocation7 + $0x78] sm:$0xff]
    %v2176 = vld [vmem:[#allocation7 + $0x80] sm:$0xff]
    %v2177 = vld [vmem:[#allocation7 + $0x88] sm:$0xff]
    %v2178 = vld [vmem:[#allocation7 + $0x90] sm:$0xff]
    %v2179 = vld [vmem:[#allocation7 + $0x98] sm:$0xff]
    %v2180 = vld [vmem:[#allocation7 + $0xa0] sm:$0xff]
    %v2181 = vld [vmem:[#allocation7 + $0xa8] sm:$0xff]
    %v2182 = vld [vmem:[#allocation7 + $0xb0] sm:$0xff]
    %v2183 = vld [vmem:[#allocation7 + $0xb8] sm:$0xff]
    %v2184 = vld [vmem:[#allocation7 + $0xc0] sm:$0xff]
    %v2185 = vld [vmem:[#allocation7 + $0xc8] sm:$0xff]
    %v2186 = vld [vmem:[#allocation7 + $0xd0] sm:$0xff]
    %v2187 = vld [vmem:[#allocation7 + $0xd8] sm:$0xff]
    %v2188 = vld [vmem:[#allocation7 + $0xe0] sm:$0xff]
    %v2189 = vld [vmem:[#allocation7 + $0xe8] sm:$0xff]
    %v2190 = vld [vmem:[#allocation7 + $0xf0] sm:$0xff]
    %v2191 = vld [vmem:[#allocation7 + $0xf8] sm:$0xff]
    %v2192 = vld [vmem:[#allocation7 + $0x100] sm:$0xff]
    %v2193 = vld [vmem:[#allocation7 + $0x108] sm:$0xff]
    %v2194 = vld [vmem:[#allocation7 + $0x110] sm:$0xff]
    %v2195 = vld [vmem:[#allocation7 + $0x118] sm:$0xff]
    %v2196 = vld [vmem:[#allocation7 + $0x120] sm:$0xff]
    %v2197 = vld [vmem:[#allocation7 + $0x128] sm:$0xff]
    %v2198 = vld [vmem:[#allocation7 + $0x130] sm:$0xff]
    %v2199 = vld [vmem:[#allocation7 + $0x138] sm:$0xff]
    %v2200 = vld [vmem:[#allocation7 + $0x140] sm:$0xff]
    %v2201 = vld [vmem:[#allocation7 + $0x148] sm:$0xff]
    %v2202 = vld [vmem:[#allocation7 + $0x150] sm:$0xff]
    %v2203 = vld [vmem:[#allocation7 + $0x158] sm:$0xff]
    %v2204 = vld [vmem:[#allocation7 + $0x160] sm:$0xff]
    %v2205 = vld [vmem:[#allocation7 + $0x168] sm:$0xff]
    %v2206 = vld [vmem:[#allocation7 + $0x170] sm:$0xff]
    %v2207 = vld [vmem:[#allocation7 + $0x178] sm:$0xff]
    %v2208 = vld [vmem:[#allocation7 + $0x180] sm:$0xff]
    %v2209 = vld [vmem:[#allocation7 + $0x188] sm:$0xff]
    %v2210 = vld [vmem:[#allocation7 + $0x190] sm:$0xff]
    %v2211 = vld [vmem:[#allocation7 + $0x198] sm:$0xff]
    %v2212 = vld [vmem:[#allocation7 + $0x1a0] sm:$0xff]
    %v2213 = vld [vmem:[#allocation7 + $0x1a8] sm:$0xff]
    %v2214 = vld [vmem:[#allocation7 + $0x1b0] sm:$0xff]
    %v2215 = vld [vmem:[#allocation7 + $0x1b8] sm:$0xff]
    %v2216 = vld [vmem:[#allocation7 + $0x1c0] sm:$0xff]
    %v2217 = vld [vmem:[#allocation7 + $0x1c8] sm:$0xff]
    %v2218 = vld [vmem:[#allocation7 + $0x1d0] sm:$0xff]
    %v2219 = vld [vmem:[#allocation7 + $0x1d8] sm:$0xff]
    %v2220 = vld [vmem:[#allocation7 + $0x1e0] sm:$0xff]
    %v2221 = vld [vmem:[#allocation7 + $0x1e8] sm:$0xff]
    %v2222 = vld [vmem:[#allocation7 + $0x1f0] sm:$0xff]
    %v2223 = vld [vmem:[#allocation7 + $0x1f8] sm:$0xff]
    %v2224 = vld [vmem:[%s4] sm:$0x3]
    %v2226 = vlaneseq
    %v2227 = vshrl.u32 %v2226, 7
    %v2228 = vsub.s32 0, %v2227
    %v2229 = vrot.slane %v2224, %v2228
    %v2230 = vlaneseq
    %v2231 = vshrl.u32 %v2230, 7
    %v2232 = vsub.s32 1, %v2231
    %v2233 = vrot.slane %v2224, %v2232
    %v2300 = vunpack.c.l.b16 %v2160
    %v2301 = vunpack.c.h.b16 %v2160
    %v2302 = vunpack.c.l.b16 %v2161
    %v2303 = vunpack.c.h.b16 %v2161
    %v2304 = vunpack.c.l.b16 %v2162
    %v2305 = vunpack.c.h.b16 %v2162
    %v2306 = vunpack.c.l.b16 %v2163
    %v2307 = vunpack.c.h.b16 %v2163
    %v2308 = vunpack.c.l.b16 %v2164
    %v2309 = vunpack.c.h.b16 %v2164
    %v2310 = vunpack.c.l.b16 %v2165
    %v2311 = vunpack.c.h.b16 %v2165
    %v2312 = vunpack.c.l.b16 %v2166
    %v2313 = vunpack.c.h.b16 %v2166
    %v2314 = vunpack.c.l.b16 %v2167
    %v2315 = vunpack.c.h.b16 %v2167
    %v2316 = vunpack.c.l.b16 %v2168
    %v2317 = vunpack.c.h.b16 %v2168
    %v2318 = vunpack.c.l.b16 %v2169
    %v2319 = vunpack.c.h.b16 %v2169
    %v2320 = vunpack.c.l.b16 %v2170
    %v2321 = vunpack.c.h.b16 %v2170
    %v2322 = vunpack.c.l.b16 %v2171
    %v2323 = vunpack.c.h.b16 %v2171
    %v2324 = vunpack.c.l.b16 %v2172
    %v2325 = vunpack.c.h.b16 %v2172
    %v2326 = vunpack.c.l.b16 %v2173
    %v2327 = vunpack.c.h.b16 %v2173
    %v2328 = vunpack.c.l.b16 %v2174
    %v2329 = vunpack.c.h.b16 %v2174
    %v2330 = vunpack.c.l.b16 %v2175
    %v2331 = vunpack.c.h.b16 %v2175
    %v2332 = vunpack.c.l.b16 %v2176
    %v2333 = vunpack.c.h.b16 %v2176
    %v2334 = vunpack.c.l.b16 %v2177
    %v2335 = vunpack.c.h.b16 %v2177
    %v2336 = vunpack.c.l.b16 %v2178
    %v2337 = vunpack.c.h.b16 %v2178
    %v2338 = vunpack.c.l.b16 %v2179
    %v2339 = vunpack.c.h.b16 %v2179
    %v2340 = vunpack.c.l.b16 %v2180
    %v2341 = vunpack.c.h.b16 %v2180
    %v2342 = vunpack.c.l.b16 %v2181
    %v2343 = vunpack.c.h.b16 %v2181
    %v2344 = vunpack.c.l.b16 %v2182
    %v2345 = vunpack.c.h.b16 %v2182
    %v2346 = vunpack.c.l.b16 %v2183
    %v2347 = vunpack.c.h.b16 %v2183
    %v2348 = vunpack.c.l.b16 %v2184
    %v2349 = vunpack.c.h.b16 %v2184
    %v2350 = vunpack.c.l.b16 %v2185
    %v2351 = vunpack.c.h.b16 %v2185
    %v2352 = vunpack.c.l.b16 %v2186
    %v2353 = vunpack.c.h.b16 %v2186
    %v2354 = vunpack.c.l.b16 %v2187
    %v2355 = vunpack.c.h.b16 %v2187
    %v2356 = vunpack.c.l.b16 %v2188
    %v2357 = vunpack.c.h.b16 %v2188
    %v2358 = vunpack.c.l.b16 %v2189
    %v2359 = vunpack.c.h.b16 %v2189
    %v2360 = vunpack.c.l.b16 %v2190
    %v2361 = vunpack.c.h.b16 %v2190
    %v2362 = vunpack.c.l.b16 %v2191
    %v2363 = vunpack.c.h.b16 %v2191
    %v2364 = vunpack.c.l.b16 %v2192
    %v2365 = vunpack.c.h.b16 %v2192
    %v2366 = vunpack.c.l.b16 %v2193
    %v2367 = vunpack.c.h.b16 %v2193
    %v2368 = vunpack.c.l.b16 %v2194
    %v2369 = vunpack.c.h.b16 %v2194
    %v2370 = vunpack.c.l.b16 %v2195
    %v2371 = vunpack.c.h.b16 %v2195
    %v2372 = vunpack.c.l.b16 %v2196
    %v2373 = vunpack.c.h.b16 %v2196
    %v2374 = vunpack.c.l.b16 %v2197
    %v2375 = vunpack.c.h.b16 %v2197
    %v2376 = vunpack.c.l.b16 %v2198
    %v2377 = vunpack.c.h.b16 %v2198
    %v2378 = vunpack.c.l.b16 %v2199
    %v2379 = vunpack.c.h.b16 %v2199
    %v2380 = vunpack.c.l.b16 %v2200
    %v2381 = vunpack.c.h.b16 %v2200
    %v2382 = vunpack.c.l.b16 %v2201
    %v2383 = vunpack.c.h.b16 %v2201
    %v2384 = vunpack.c.l.b16 %v2202
    %v2385 = vunpack.c.h.b16 %v2202
    %v2386 = vunpack.c.l.b16 %v2203
    %v2387 = vunpack.c.h.b16 %v2203
    %v2388 = vunpack.c.l.b16 %v2204
    %v2389 = vunpack.c.h.b16 %v2204
    %v2390 = vunpack.c.l.b16 %v2205
    %v2391 = vunpack.c.h.b16 %v2205
    %v2392 = vunpack.c.l.b16 %v2206
    %v2393 = vunpack.c.h.b16 %v2206
    %v2394 = vunpack.c.l.b16 %v2207
    %v2395 = vunpack.c.h.b16 %v2207
    %v2396 = vunpack.c.l.b16 %v2208
    %v2397 = vunpack.c.h.b16 %v2208
    %v2398 = vunpack.c.l.b16 %v2209
    %v2399 = vunpack.c.h.b16 %v2209
    %v2400 = vunpack.c.l.b16 %v2210
    %v2401 = vunpack.c.h.b16 %v2210
    %v2402 = vunpack.c.l.b16 %v2211
    %v2403 = vunpack.c.h.b16 %v2211
    %v2404 = vunpack.c.l.b16 %v2212
    %v2405 = vunpack.c.h.b16 %v2212
    %v2406 = vunpack.c.l.b16 %v2213
    %v2407 = vunpack.c.h.b16 %v2213
    %v2408 = vunpack.c.l.b16 %v2214
    %v2409 = vunpack.c.h.b16 %v2214
    %v2410 = vunpack.c.l.b16 %v2215
    %v2411 = vunpack.c.h.b16 %v2215
    %v2412 = vunpack.c.l.b16 %v2216
    %v2413 = vunpack.c.h.b16 %v2216
    %v2414 = vunpack.c.l.b16 %v2217
    %v2415 = vunpack.c.h.b16 %v2217
    %v2416 = vunpack.c.l.b16 %v2218
    %v2417 = vunpack.c.h.b16 %v2218
    %v2418 = vunpack.c.l.b16 %v2219
    %v2419 = vunpack.c.h.b16 %v2219
    %v2420 = vunpack.c.l.b16 %v2220
    %v2421 = vunpack.c.h.b16 %v2220
    %v2422 = vunpack.c.l.b16 %v2221
    %v2423 = vunpack.c.h.b16 %v2221
    %v2424 = vunpack.c.l.b16 %v2222
    %v2425 = vunpack.c.h.b16 %v2222
    %v2426 = vunpack.c.l.b16 %v2223
    %v2427 = vunpack.c.h.b16 %v2223
    %v2428 = vpack.c.b16 %v2302, %v2300
    %v2429 = vpack.c.b16 %v2303, %v2301
    %v2430 = vpack.c.b16 %v2306, %v2304
    %v2431 = vpack.c.b16 %v2307, %v2305
    %v2432 = vpack.c.b16 %v2310, %v2308
    %v2433 = vpack.c.b16 %v2311, %v2309
    %v2434 = vpack.c.b16 %v2314, %v2312
    %v2435 = vpack.c.b16 %v2315, %v2313
    %v2436 = vpack.c.b16 %v2318, %v2316
    %v2437 = vpack.c.b16 %v2319, %v2317
    %v2438 = vpack.c.b16 %v2322, %v2320
    %v2439 = vpack.c.b16 %v2323, %v2321
    %v2440 = vpack.c.b16 %v2326, %v2324
    %v2441 = vpack.c.b16 %v2327, %v2325
    %v2442 = vpack.c.b16 %v2330, %v2328
    %v2443 = vpack.c.b16 %v2331, %v2329
    %v2444 = vpack.c.b16 %v2334, %v2332
    %v2445 = vpack.c.b16 %v2335, %v2333
    %v2446 = vpack.c.b16 %v2338, %v2336
    %v2447 = vpack.c.b16 %v2339, %v2337
    %v2448 = vpack.c.b16 %v2342, %v2340
    %v2449 = vpack.c.b16 %v2343, %v2341
    %v2450 = vpack.c.b16 %v2346, %v2344
    %v2451 = vpack.c.b16 %v2347, %v2345
    %v2452 = vpack.c.b16 %v2350, %v2348
    %v2453 = vpack.c.b16 %v2351, %v2349
    %v2454 = vpack.c.b16 %v2354, %v2352
    %v2455 = vpack.c.b16 %v2355, %v2353
    %v2456 = vpack.c.b16 %v2358, %v2356
    %v2457 = vpack.c.b16 %v2359, %v2357
    %v2458 = vpack.c.b16 %v2362, %v2360
    %v2459 = vpack.c.b16 %v2363, %v2361
    %v2460 = vpack.c.b16 %v2366, %v2364
    %v2461 = vpack.c.b16 %v2367, %v2365
    %v2462 = vpack.c.b16 %v2370, %v2368
    %v2463 = vpack.c.b16 %v2371, %v2369
    %v2464 = vpack.c.b16 %v2374, %v2372
    %v2465 = vpack.c.b16 %v2375, %v2373
    %v2466 = vpack.c.b16 %v2378, %v2376
    %v2467 = vpack.c.b16 %v2379, %v2377
    %v2468 = vpack.c.b16 %v2382, %v2380
    %v2469 = vpack.c.b16 %v2383, %v2381
    %v2470 = vpack.c.b16 %v2386, %v2384
    %v2471 = vpack.c.b16 %v2387, %v2385
    %v2472 = vpack.c.b16 %v2390, %v2388
    %v2473 = vpack.c.b16 %v2391, %v2389
    %v2474 = vpack.c.b16 %v2394, %v2392
    %v2475 = vpack.c.b16 %v2395, %v2393
    %v2476 = vpack.c.b16 %v2398, %v2396
    %v2477 = vpack.c.b16 %v2399, %v2397
    %v2478 = vpack.c.b16 %v2402, %v2400
    %v2479 = vpack.c.b16 %v2403, %v2401
    %v2480 = vpack.c.b16 %v2406, %v2404
    %v2481 = vpack.c.b16 %v2407, %v2405
    %v2482 = vpack.c.b16 %v2410, %v2408
    %v2483 = vpack.c.b16 %v2411, %v2409
    %v2484 = vpack.c.b16 %v2414, %v2412
    %v2485 = vpack.c.b16 %v2415, %v2413
    %v2486 = vpack.c.b16 %v2418, %v2416
    %v2487 = vpack.c.b16 %v2419, %v2417
    %v2488 = vpack.c.b16 %v2422, %v2420
    %v2489 = vpack.c.b16 %v2423, %v2421
    %v2490 = vpack.c.b16 %v2426, %v2424
    %v2491 = vpack.c.b16 %v2427, %v2425
    %2556 = vmatprep.subr.bf16.mxu0 %v2429
    %2557 = vmatpush1.bf16.msra.mxu0 %v2428
    %2558 = vmatprep.subr.bf16.mxu0 %v2431
    %2559 = vmatpush1.bf16.msra.mxu0 %v2430
    %2560 = vmatprep.subr.bf16.mxu0 %v2433
    %2561 = vmatpush1.bf16.msra.mxu0 %v2432
    %2562 = vmatprep.subr.bf16.mxu0 %v2435
    %2563 = vmatpush1.bf16.msra.mxu0 %v2434
    %2564 = vmatprep.subr.bf16.mxu0 %v2437
    %2565 = vmatpush1.bf16.msra.mxu0 %v2436
    %2566 = vmatprep.subr.bf16.mxu0 %v2439
    %2567 = vmatpush1.bf16.msra.mxu0 %v2438
    %2568 = vmatprep.subr.bf16.mxu0 %v2441
    %2569 = vmatpush1.bf16.msra.mxu0 %v2440
    %2570 = vmatprep.subr.bf16.mxu0 %v2443
    %2571 = vmatpush1.bf16.msra.mxu0 %v2442
    %2572 = vmatprep.subr.bf16.mxu0 %v2445
    %2573 = vmatpush1.bf16.msra.mxu0 %v2444
    %2574 = vmatprep.subr.bf16.mxu0 %v2447
    %2575 = vmatpush1.bf16.msra.mxu0 %v2446
    %2576 = vmatprep.subr.bf16.mxu0 %v2449
    %2577 = vmatpush1.bf16.msra.mxu0 %v2448
    %2578 = vmatprep.subr.bf16.mxu0 %v2451
    %2579 = vmatpush1.bf16.msra.mxu0 %v2450
    %2580 = vmatprep.subr.bf16.mxu0 %v2453
    %2581 = vmatpush1.bf16.msra.mxu0 %v2452
    %2582 = vmatprep.subr.bf16.mxu0 %v2455
    %2583 = vmatpush1.bf16.msra.mxu0 %v2454
    %2584 = vmatprep.subr.bf16.mxu0 %v2457
    %2585 = vmatpush1.bf16.msra.mxu0 %v2456
    %2586 = vmatprep.subr.bf16.mxu0 %v2459
    %2587 = vmatpush1.bf16.msra.mxu0 %v2458
    %2588 = vmatprep.mubr.bf16.mxu0 %v2129
    %2589 = vmatmul.mubr.bf16.gmra.mrb[0].mxu0 %v2128
    %v2590 = vpop.f32.mrb[0].mxu0
    %v2591 = vadd.f32 %v2229, %v2590
    %v2592 = vpop.f32.mrb[0].mxu0
    %v2593 = vadd.f32 %v2233, %v2592
    %v2594 = vpop.f32.mrb[0].mxu0
    %v2595 = vadd.f32 %v2229, %v2594
    %v2596 = vpop.f32.mrb[0].mxu0
    %v2597 = vadd.f32 %v2233, %v2596
    %2598 = vmatprep.mubr.bf16.mxu0 %v2133
    %2599 = vmatmul.mubr.bf16.gmra.mrb[0].mxu0 %v2132
    %v2600 = vpop.f32.mrb[0].mxu0
    %v2601 = vadd.f32 %v2229, %v2600
    %v2602 = vpop.f32.mrb[0].mxu0
    %v2603 = vadd.f32 %v2233, %v2602
    %v2604 = vpop.f32.mrb[0].mxu0
    %v2605 = vadd.f32 %v2229, %v2604
    %v2606 = vpop.f32.mrb[0].mxu0
    %v2607 = vadd.f32 %v2233, %v2606
    %2608 = vmatprep.mubr.bf16.mxu0 %v2137
    %2609 = vmatmul.mubr.bf16.gmra.mrb[0].mxu0 %v2136
    %v2610 = vpop.f32.mrb[0].mxu0
    %v2611 = vadd.f32 %v2229, %v2610
    %v2612 = vpop.f32.mrb[0].mxu0
    %v2613 = vadd.f32 %v2233, %v2612
    %v2614 = vpop.f32.mrb[0].mxu0
    %v2615 = vadd.f32 %v2229, %v2614
    %v2616 = vpop.f32.mrb[0].mxu0
    %v2617 = vadd.f32 %v2233, %v2616
    %2618 = vmatprep.mubr.bf16.mxu0 %v2141
    %2619 = vmatmul.mubr.bf16.gmra.mrb[0].mxu0 %v2140
    %v2620 = vpop.f32.mrb[0].mxu0
    %v2621 = vadd.f32 %v2229, %v2620
    %v2622 = vpop.f32.mrb[0].mxu0
    %v2623 = vadd.f32 %v2233, %v2622
    %v2624 = vpop.f32.mrb[0].mxu0
    %v2625 = vadd.f32 %v2229, %v2624
    %v2626 = vpop.f32.mrb[0].mxu0
    %v2627 = vadd.f32 %v2233, %v2626
    %2628 = vmatprep.mubr.bf16.mxu0 %v2145
    %2629 = vmatmul.mubr.bf16.gmra.mrb[0].mxu0 %v2144
    %v2630 = vpop.f32.mrb[0].mxu0
    %v2631 = vadd.f32 %v2229, %v2630
    %v2632 = vpop.f32.mrb[0].mxu0
    %v2633 = vadd.f32 %v2233, %v2632
    %v2634 = vpop.f32.mrb[0].mxu0
    %v2635 = vadd.f32 %v2229, %v2634
    %v2636 = vpop.f32.mrb[0].mxu0
    %v2637 = vadd.f32 %v2233, %v2636
    %2638 = vmatprep.mubr.bf16.mxu0 %v2149
    %2639 = vmatmul.mubr.bf16.gmra.mrb[0].mxu0 %v2148
    %v2640 = vpop.f32.mrb[0].mxu0
    %v2641 = vadd.f32 %v2229, %v2640
    %v2642 = vpop.f32.mrb[0].mxu0
    %v2643 = vadd.f32 %v2233, %v2642
    %v2644 = vpop.f32.mrb[0].mxu0
    %v2645 = vadd.f32 %v2229, %v2644
    %v2646 = vpop.f32.mrb[0].mxu0
    %v2647 = vadd.f32 %v2233, %v2646
    %2648 = vmatprep.mubr.bf16.mxu0 %v2153
    %2649 = vmatmul.mubr.bf16.gmra.mrb[0].mxu0 %v2152
    %v2650 = vpop.f32.mrb[0].mxu0
    %v2651 = vadd.f32 %v2229, %v2650
    %v2652 = vpop.f32.mrb[0].mxu0
    %v2653 = vadd.f32 %v2233, %v2652
    %v2654 = vpop.f32.mrb[0].mxu0
    %v2655 = vadd.f32 %v2229, %v2654
    %v2656 = vpop.f32.mrb[0].mxu0
    %v2657 = vadd.f32 %v2233, %v2656
    %2658 = vmatprep.mubr.bf16.mxu0 %v2157
    %2659 = vmatmul.mubr.bf16.gmra.mrb[0].mxu0 %v2156
    %v2660 = vpop.f32.mrb[0].mxu0
    %v2661 = vadd.f32 %v2229, %v2660
    %v2662 = vpop.f32.mrb[0].mxu0
    %v2663 = vadd.f32 %v2233, %v2662
    %v2664 = vpop.f32.mrb[0].mxu0
    %v2665 = vadd.f32 %v2229, %v2664
    %v2666 = vpop.f32.mrb[0].mxu0
    %v2667 = vadd.f32 %v2233, %v2666
    %2668 = vdwg.mxu0
    %2669 = vmatprep.subr.bf16.mxu0 %v2461
    %2670 = vmatpush1.bf16.msra.mxu0 %v2460
    %2671 = vmatprep.subr.bf16.mxu0 %v2463
    %2672 = vmatpush1.bf16.msra.mxu0 %v2462
    %2673 = vmatprep.subr.bf16.mxu0 %v2465
    %2674 = vmatpush1.bf16.msra.mxu0 %v2464
    %2675 = vmatprep.subr.bf16.mxu0 %v2467
    %2676 = vmatpush1.bf16.msra.mxu0 %v2466
    %2677 = vmatprep.subr.bf16.mxu0 %v2469
    %2678 = vmatpush1.bf16.msra.mxu0 %v2468
    %2679 = vmatprep.subr.bf16.mxu0 %v2471
    %2680 = vmatpush1.bf16.msra.mxu0 %v2470
    %2681 = vmatprep.subr.bf16.mxu0 %v2473
    %2682 = vmatpush1.bf16.msra.mxu0 %v2472
    %2683 = vmatprep.subr.bf16.mxu0 %v2475
    %2684 = vmatpush1.bf16.msra.mxu0 %v2474
    %2685 = vmatprep.subr.bf16.mxu0 %v2477
    %2686 = vmatpush1.bf16.msra.mxu0 %v2476
    %2687 = vmatprep.subr.bf16.mxu0 %v2479
    %2688 = vmatpush1.bf16.msra.mxu0 %v2478
    %2689 = vmatprep.subr.bf16.mxu0 %v2481
    %2690 = vmatpush1.bf16.msra.mxu0 %v2480
    %2691 = vmatprep.subr.bf16.mxu0 %v2483
    %2692 = vmatpush1.bf16.msra.mxu0 %v2482
    %2693 = vmatprep.subr.bf16.mxu0 %v2485
    %2694 = vmatpush1.bf16.msra.mxu0 %v2484
    %2695 = vmatprep.subr.bf16.mxu0 %v2487
    %2696 = vmatpush1.bf16.msra.mxu0 %v2486
    %2697 = vmatprep.subr.bf16.mxu0 %v2489
    %2698 = vmatpush1.bf16.msra.mxu0 %v2488
    %2699 = vmatprep.subr.bf16.mxu0 %v2491
    %2700 = vmatpush1.bf16.msra.mxu0 %v2490
    %2701 = vmatprep.mubr.bf16.mxu0 %v2131
    %2702 = vmatmul.mubr.bf16.gmra.mrb[0].mxu0 %v2130
    %v2703 = vpop.f32.mrb[0].mxu0
    %v2704 = vadd.f32 %v2591, %v2703
    %v2705 = vpop.f32.mrb[0].mxu0
    %v2706 = vadd.f32 %v2593, %v2705
    %v2707 = vpop.f32.mrb[0].mxu0
    %v2708 = vadd.f32 %v2595, %v2707
    %v2709 = vpop.f32.mrb[0].mxu0
    %v2710 = vadd.f32 %v2597, %v2709
    %2711 = vmatprep.mubr.bf16.mxu0 %v2135
    %2712 = vmatmul.mubr.bf16.gmra.mrb[0].mxu0 %v2134
    %v2713 = vpop.f32.mrb[0].mxu0
    %v2714 = vadd.f32 %v2601, %v2713
    %v2715 = vpop.f32.mrb[0].mxu0
    %v2716 = vadd.f32 %v2603, %v2715
    %v2717 = vpop.f32.mrb[0].mxu0
    %v2718 = vadd.f32 %v2605, %v2717
    %v2719 = vpop.f32.mrb[0].mxu0
    %v2720 = vadd.f32 %v2607, %v2719
    %2721 = vmatprep.mubr.bf16.mxu0 %v2139
    %2722 = vmatmul.mubr.bf16.gmra.mrb[0].mxu0 %v2138
    %v2723 = vpop.f32.mrb[0].mxu0
    %v2724 = vadd.f32 %v2611, %v2723
    %v2725 = vpop.f32.mrb[0].mxu0
    %v2726 = vadd.f32 %v2613, %v2725
    %v2727 = vpop.f32.mrb[0].mxu0
    %v2728 = vadd.f32 %v2615, %v2727
    %v2729 = vpop.f32.mrb[0].mxu0
    %v2730 = vadd.f32 %v2617, %v2729
    %2731 = vmatprep.mubr.bf16.mxu0 %v2143
    %2732 = vmatmul.mubr.bf16.gmra.mrb[0].mxu0 %v2142
    %v2733 = vpop.f32.mrb[0].mxu0
    %v2734 = vadd.f32 %v2621, %v2733
    %v2735 = vpop.f32.mrb[0].mxu0
    %v2736 = vadd.f32 %v2623, %v2735
    %v2737 = vpop.f32.mrb[0].mxu0
    %v2738 = vadd.f32 %v2625, %v2737
    %v2739 = vpop.f32.mrb[0].mxu0
    %v2740 = vadd.f32 %v2627, %v2739
    %2741 = vmatprep.mubr.bf16.mxu0 %v2147
    %2742 = vmatmul.mubr.bf16.gmra.mrb[0].mxu0 %v2146
    %v2743 = vpop.f32.mrb[0].mxu0
    %v2744 = vadd.f32 %v2631, %v2743
    %v2745 = vpop.f32.mrb[0].mxu0
    %v2746 = vadd.f32 %v2633, %v2745
    %v2747 = vpop.f32.mrb[0].mxu0
    %v2748 = vadd.f32 %v2635, %v2747
    %v2749 = vpop.f32.mrb[0].mxu0
    %v2750 = vadd.f32 %v2637, %v2749
    %2751 = vmatprep.mubr.bf16.mxu0 %v2151
    %2752 = vmatmul.mubr.bf16.gmra.mrb[0].mxu0 %v2150
    %v2753 = vpop.f32.mrb[0].mxu0
    %v2754 = vadd.f32 %v2641, %v2753
    %v2755 = vpop.f32.mrb[0].mxu0
    %v2756 = vadd.f32 %v2643, %v2755
    %v2757 = vpop.f32.mrb[0].mxu0
    %v2758 = vadd.f32 %v2645, %v2757
    %v2759 = vpop.f32.mrb[0].mxu0
    %v2760 = vadd.f32 %v2647, %v2759
    %2761 = vmatprep.mubr.bf16.mxu0 %v2155
    %2762 = vmatmul.mubr.bf16.gmra.mrb[0].mxu0 %v2154
    %v2763 = vpop.f32.mrb[0].mxu0
    %v2764 = vadd.f32 %v2651, %v2763
    %v2765 = vpop.f32.mrb[0].mxu0
    %v2766 = vadd.f32 %v2653, %v2765
    %v2767 = vpop.f32.mrb[0].mxu0
    %v2768 = vadd.f32 %v2655, %v2767
    %v2769 = vpop.f32.mrb[0].mxu0
    %v2770 = vadd.f32 %v2657, %v2769
    %2771 = vmatprep.mubr.bf16.mxu0 %v2159
    %2772 = vmatmul.mubr.bf16.gmra.mrb[0].mxu0 %v2158
    %v2773 = vpop.f32.mrb[0].mxu0
    %v2774 = vadd.f32 %v2661, %v2773
    %v2775 = vpop.f32.mrb[0].mxu0
    %v2776 = vadd.f32 %v2663, %v2775
    %v2777 = vpop.f32.mrb[0].mxu0
    %v2778 = vadd.f32 %v2665, %v2777
    %v2779 = vpop.f32.mrb[0].mxu0
    %v2780 = vadd.f32 %v2667, %v2779
    %2781 = vdwg.mxu0
    %v2782 = vmax.f32 %v2704, 0.0
    %v2783 = vmax.f32 %v2706, 0.0
    %v2784 = vmax.f32 %v2708, 0.0
    %v2785 = vmax.f32 %v2710, 0.0
    %v2786 = vmax.f32 %v2714, 0.0
    %v2787 = vmax.f32 %v2716, 0.0
    %v2788 = vmax.f32 %v2718, 0.0
    %v2789 = vmax.f32 %v2720, 0.0
    %v2790 = vmax.f32 %v2724, 0.0
    %v2791 = vmax.f32 %v2726, 0.0
    %v2792 = vmax.f32 %v2728, 0.0
    %v2793 = vmax.f32 %v2730, 0.0
    %v2794 = vmax.f32 %v2734, 0.0
    %v2795 = vmax.f32 %v2736, 0.0
    %v2796 = vmax.f32 %v2738, 0.0
    %v2797 = vmax.f32 %v2740, 0.0
    %v2798 = vmax.f32 %v2744, 0.0
    %v2799 = vmax.f32 %v2746, 0.0
    %v2800 = vmax.f32 %v2748, 0.0
    %v2801 = vmax.f32 %v2750, 0.0
    %v2802 = vmax.f32 %v2754, 0.0
    %v2803 = vmax.f32 %v2756, 0.0
    %v2804 = vmax.f32 %v2758, 0.0
    %v2805 = vmax.f32 %v2760, 0.0
    %v2806 = vmax.f32 %v2764, 0.0
    %v2807 = vmax.f32 %v2766, 0.0
    %v2808 = vmax.f32 %v2768, 0.0
    %v2809 = vmax.f32 %v2770, 0.0
    %v2810 = vmax.f32 %v2774, 0.0
    %v2811 = vmax.f32 %v2776, 0.0
    %v2812 = vmax.f32 %v2778, 0.0
    %v2813 = vmax.f32 %v2780, 0.0
    %v2814 = vld [vmem:[%s5] sm:$0x3]
    %v2816 = vlaneseq
    %v2817 = vshrl.u32 %v2816, 7
    %v2818 = vsub.s32 0, %v2817
    %v2819 = vrot.slane %v2814, %v2818
    %v2820 = vlaneseq
    %v2821 = vshrl.u32 %v2820, 7
    %v2822 = vsub.s32 1, %v2821
    %v2823 = vrot.slane %v2814, %v2822
    %v2826 = vmul.f32 %v2782, %v2819
    %v2827 = vmul.f32 %v2783, %v2823
    %v2828 = vmul.f32 %v2784, %v2819
    %v2829 = vmul.f32 %v2785, %v2823
    %v2830 = vmul.f32 %v2786, %v2819
    %v2831 = vmul.f32 %v2787, %v2823
    %v2832 = vmul.f32 %v2788, %v2819
    %v2833 = vmul.f32 %v2789, %v2823
    %v2834 = vmul.f32 %v2790, %v2819
    %v2835 = vmul.f32 %v2791, %v2823
    %v2836 = vmul.f32 %v2792, %v2819
    %v2837 = vmul.f32 %v2793, %v2823
    %v2838 = vmul.f32 %v2794, %v2819
    %v2839 = vmul.f32 %v2795, %v2823
    %v2840 = vmul.f32 %v2796, %v2819
    %v2841 = vmul.f32 %v2797, %v2823
    %v2842 = vmul.f32 %v2798, %v2819
    %v2843 = vmul.f32 %v2799, %v2823
    %v2844 = vmul.f32 %v2800, %v2819
    %v2845 = vmul.f32 %v2801, %v2823
    %v2846 = vmul.f32 %v2802, %v2819
    %v2847 = vmul.f32 %v2803, %v2823
    %v2848 = vmul.f32 %v2804, %v2819
    %v2849 = vmul.f32 %v2805, %v2823
    %v2850 = vmul.f32 %v2806, %v2819
    %v2851 = vmul.f32 %v2807, %v2823
    %v2852 = vmul.f32 %v2808, %v2819
    %v2853 = vmul.f32 %v2809, %v2823
    %v2854 = vmul.f32 %v2810, %v2819
    %v2855 = vmul.f32 %v2811, %v2823
    %v2856 = vmul.f32 %v2812, %v2819
    %v2857 = vmul.f32 %v2813, %v2823
    %v2858 = vadd.f32 %v2826, %v2827
    %2859 = vadd.xlane.f32.xlu0 %v2858
    %v2860 = vpop.xlane.xlu0 %2859
    %v2861 = vadd.f32 %v2828, %v2829
    %2862 = vadd.xlane.f32.xlu0 %v2861
    %v2863 = vpop.xlane.xlu0 %2862
    %v2864 = vadd.f32 %v2830, %v2831
    %2865 = vadd.xlane.f32.xlu0 %v2864
    %v2866 = vpop.xlane.xlu0 %2865
    %v2867 = vadd.f32 %v2832, %v2833
    %2868 = vadd.xlane.f32.xlu0 %v2867
    %v2869 = vpop.xlane.xlu0 %2868
    %v2870 = vadd.f32 %v2834, %v2835
    %2871 = vadd.xlane.f32.xlu0 %v2870
    %v2872 = vpop.xlane.xlu0 %2871
    %v2873 = vadd.f32 %v2836, %v2837
    %2874 = vadd.xlane.f32.xlu0 %v2873
    %v2875 = vpop.xlane.xlu0 %2874
    %v2876 = vadd.f32 %v2838, %v2839
    %2877 = vadd.xlane.f32.xlu0 %v2876
    %v2878 = vpop.xlane.xlu0 %2877
    %v2879 = vadd.f32 %v2840, %v2841
    %2880 = vadd.xlane.f32.xlu0 %v2879
    %v2881 = vpop.xlane.xlu0 %2880
    %v2882 = vadd.f32 %v2842, %v2843
    %2883 = vadd.xlane.f32.xlu0 %v2882
    %v2884 = vpop.xlane.xlu0 %2883
    %v2885 = vadd.f32 %v2844, %v2845
    %2886 = vadd.xlane.f32.xlu0 %v2885
    %v2887 = vpop.xlane.xlu0 %2886
    %v2888 = vadd.f32 %v2846, %v2847
    %2889 = vadd.xlane.f32.xlu0 %v2888
    %v2890 = vpop.xlane.xlu0 %2889
    %v2891 = vadd.f32 %v2848, %v2849
    %2892 = vadd.xlane.f32.xlu0 %v2891
    %v2893 = vpop.xlane.xlu0 %2892
    %v2894 = vadd.f32 %v2850, %v2851
    %2895 = vadd.xlane.f32.xlu0 %v2894
    %v2896 = vpop.xlane.xlu0 %2895
    %v2897 = vadd.f32 %v2852, %v2853
    %2898 = vadd.xlane.f32.xlu0 %v2897
    %v2899 = vpop.xlane.xlu0 %2898
    %v2900 = vadd.f32 %v2854, %v2855
    %2901 = vadd.xlane.f32.xlu0 %v2900
    %v2902 = vpop.xlane.xlu0 %2901
    %v2903 = vadd.f32 %v2856, %v2857
    %2904 = vadd.xlane.f32.xlu0 %v2903
    %v2905 = vpop.xlane.xlu0 %2904
    %s2906 = sld [smem:[#allocation2]]
    %v2907 = vstv %s2906
    %v2908 = vadd.f32 %v2860, %v2907
    %v2909 = vadd.f32 %v2863, %v2907
    %v2910 = vadd.f32 %v2866, %v2907
    %v2911 = vadd.f32 %v2869, %v2907
    %v2912 = vadd.f32 %v2872, %v2907
    %v2913 = vadd.f32 %v2875, %v2907
    %v2914 = vadd.f32 %v2878, %v2907
    %v2915 = vadd.f32 %v2881, %v2907
    %v2916 = vadd.f32 %v2884, %v2907
    %v2917 = vadd.f32 %v2887, %v2907
    %v2918 = vadd.f32 %v2890, %v2907
    %v2919 = vadd.f32 %v2893, %v2907
    %v2920 = vadd.f32 %v2896, %v2907
    %v2921 = vadd.f32 %v2899, %v2907
    %v2922 = vadd.f32 %v2902, %v2907
    %v2923 = vadd.f32 %v2905, %v2907
    %v2924 = vxor.u32 %v2908, 2147483648
    %v2925 = vxor.u32 %v2909, 2147483648
    %v2926 = vxor.u32 %v2910, 2147483648
    %v2927 = vxor.u32 %v2911, 2147483648
    %v2928 = vxor.u32 %v2912, 2147483648
    %v2929 = vxor.u32 %v2913, 2147483648
    %v2930 = vxor.u32 %v2914, 2147483648
    %v2931 = vxor.u32 %v2915, 2147483648
    %v2932 = vxor.u32 %v2916, 2147483648
    %v2933 = vxor.u32 %v2917, 2147483648
    %v2934 = vxor.u32 %v2918, 2147483648
    %v2935 = vxor.u32 %v2919, 2147483648
    %v2936 = vxor.u32 %v2920, 2147483648
    %v2937 = vxor.u32 %v2921, 2147483648
    %v2938 = vxor.u32 %v2922, 2147483648
    %v2939 = vxor.u32 %v2923, 2147483648
    %v2940 = vmul.f32 %v2924, 1.442695
    %v2941 = vpow.pop %v2940
    %v2942 = vmul.f32 %v2925, 1.442695
    %v2943 = vpow.pop %v2942
    %v2944 = vmul.f32 %v2926, 1.442695
    %v2945 = vpow.pop %v2944
    %v2946 = vmul.f32 %v2927, 1.442695
    %v2947 = vpow.pop %v2946
    %v2948 = vmul.f32 %v2928, 1.442695
    %v2949 = vpow.pop %v2948
    %v2950 = vmul.f32 %v2929, 1.442695
    %v2951 = vpow.pop %v2950
    %v2952 = vmul.f32 %v2930, 1.442695
    %v2953 = vpow.pop %v2952
    %v2954 = vmul.f32 %v2931, 1.442695
    %v2955 = vpow.pop %v2954
    %v2956 = vmul.f32 %v2932, 1.442695
    %v2957 = vpow.pop %v2956
    %v2958 = vmul.f32 %v2933, 1.442695
    %v2959 = vpow.pop %v2958
    %v2960 = vmul.f32 %v2934, 1.442695
    %v2961 = vpow.pop %v2960
    %v2962 = vmul.f32 %v2935, 1.442695
    %v2963 = vpow.pop %v2962
    %v2964 = vmul.f32 %v2936, 1.442695
    %v2965 = vpow.pop %v2964
    %v2966 = vmul.f32 %v2937, 1.442695
    %v2967 = vpow.pop %v2966
    %v2968 = vmul.f32 %v2938, 1.442695
    %v2969 = vpow.pop %v2968
    %v2970 = vmul.f32 %v2939, 1.442695
    %v2971 = vpow.pop %v2970
    %v2972 = vadd.f32 %v2941, 1.0
    %v2973 = vadd.f32 %v2943, 1.0
    %v2974 = vadd.f32 %v2945, 1.0
    %v2975 = vadd.f32 %v2947, 1.0
    %v2976 = vadd.f32 %v2949, 1.0
    %v2977 = vadd.f32 %v2951, 1.0
    %v2978 = vadd.f32 %v2953, 1.0
    %v2979 = vadd.f32 %v2955, 1.0
    %v2980 = vadd.f32 %v2957, 1.0
    %v2981 = vadd.f32 %v2959, 1.0
    %v2982 = vadd.f32 %v2961, 1.0
    %v2983 = vadd.f32 %v2963, 1.0
    %v2984 = vadd.f32 %v2965, 1.0
    %v2985 = vadd.f32 %v2967, 1.0
    %v2986 = vadd.f32 %v2969, 1.0
    %v2987 = vadd.f32 %v2971, 1.0
    %v2988 = vrcp.pop %v2972
    %v2989 = vmul.f32 1.0, %v2988
    %v2990 = vrcp.pop %v2973
    %v2991 = vmul.f32 1.0, %v2990
    %v2992 = vrcp.pop %v2974
    %v2993 = vmul.f32 1.0, %v2992
    %v2994 = vrcp.pop %v2975
    %v2995 = vmul.f32 1.0, %v2994
    %v2996 = vrcp.pop %v2976
    %v2997 = vmul.f32 1.0, %v2996
    %v2998 = vrcp.pop %v2977
    %v2999 = vmul.f32 1.0, %v2998
    %v3000 = vrcp.pop %v2978
    %v3001 = vmul.f32 1.0, %v3000
    %v3002 = vrcp.pop %v2979
    %v3003 = vmul.f32 1.0, %v3002
    %v3004 = vrcp.pop %v2980
    %v3005 = vmul.f32 1.0, %v3004
    %v3006 = vrcp.pop %v2981
    %v3007 = vmul.f32 1.0, %v3006
    %v3008 = vrcp.pop %v2982
    %v3009 = vmul.f32 1.0, %v3008
    %v3010 = vrcp.pop %v2983
    %v3011 = vmul.f32 1.0, %v3010
    %v3012 = vrcp.pop %v2984
    %v3013 = vmul.f32 1.0, %v3012
    %v3014 = vrcp.pop %v2985
    %v3015 = vmul.f32 1.0, %v3014
    %v3016 = vrcp.pop %v2986
    %v3017 = vmul.f32 1.0, %v3016
    %v3018 = vrcp.pop %v2987
    %v3019 = vmul.f32 1.0, %v3018
    %vm3020 = vcmask 7168
    %3021 = vst.msk [vmem:[%s7] sm:$0xff] %vm3020, %v2989
    %3022 = vst.msk [vmem:[%s7 + $0x8] sm:$0xff] %vm3020, %v2991
    %3023 = vst.msk [vmem:[%s7 + $0x10] sm:$0xff] %vm3020, %v2993
    %3024 = vst.msk [vmem:[%s7 + $0x18] sm:$0xff] %vm3020, %v2995
    %3025 = vst.msk [vmem:[%s7 + $0x20] sm:$0xff] %vm3020, %v2997
    %3026 = vst.msk [vmem:[%s7 + $0x28] sm:$0xff] %vm3020, %v2999
    %3027 = vst.msk [vmem:[%s7 + $0x30] sm:$0xff] %vm3020, %v3001
    %3028 = vst.msk [vmem:[%s7 + $0x38] sm:$0xff] %vm3020, %v3003
    %3029 = vst.msk [vmem:[%s7 + $0x40] sm:$0xff] %vm3020, %v3005
    %3030 = vst.msk [vmem:[%s7 + $0x48] sm:$0xff] %vm3020, %v3007
    %3031 = vst.msk [vmem:[%s7 + $0x50] sm:$0xff] %vm3020, %v3009
    %3032 = vst.msk [vmem:[%s7 + $0x58] sm:$0xff] %vm3020, %v3011
    %3033 = vst.msk [vmem:[%s7 + $0x60] sm:$0xff] %vm3020, %v3013
    %3034 = vst.msk [vmem:[%s7 + $0x68] sm:$0xff] %vm3020, %v3015
    %3035 = vst.msk [vmem:[%s7 + $0x70] sm:$0xff] %vm3020, %v3017
    %3036 = vst.msk [vmem:[%s7 + $0x78] sm:$0xff] %vm3020, %v3019
    // Predicated region
    $region42: #{tpu_custom_call.1} parent=1 // pred_check
      _
    $region43: #{tpu_custom_call.1} parent=1 // pred_check_branch
      %3038 = sbr.rel (0) target = $region45
    $region44: #{tpu_custom_call.1} parent=1 // pred_region
      _
    $region45: #{tpu_custom_call.1} parent=1 // pred_fallthru
      _
    // Predicated region
    $region46: #{tpu_custom_call.1} parent=1 // pred_check
      _
    $region47: #{tpu_custom_call.1} parent=1 // pred_check_branch
      %3040 = sbr.rel (0) target = $region49
    $region48: #{tpu_custom_call.1} parent=1 // pred_region
      _
    $region49: #{tpu_custom_call.1} parent=1 // pred_fallthru
      _
    %3041 = vsyncpa [#allocation4], 1
    %3042 = vsyncpa [#allocation6], 1

</llo_original>
